<compile_context>
chip_gen: v7x
topology: tpu7x:2x2x1
jax: 0.10.0
libtpu: 0.0.40
codegen_flags: <defaults>
</compile_context>

<pallas_src>
import jax
import jax.numpy as jnp
from jax import lax
from jax.experimental import pallas as pl
from jax.experimental.pallas import tpu as pltpu


def tile_task_forward(x_nchw, merge_nchw, conv_weight, conv_bias, *,
                      use_bf16_matmul=False):
    """relu(maxpool_2x2(conv(pad(x)) + bias + merge)) -> NCHW, fused in Pallas."""
    N, C, H, W = x_nchw.shape
    OC, _, KH, KW = conv_weight.shape
    ph_t = ph_b = pw_l = pw_r = 1            # conv_pads (F.pad order: W then H)
    PKH = PKW = 2                            # pool kernel / stride, pool_pads = 0

    OH = H + ph_t + ph_b - KH + 1            # 16
    OW = W + pw_l + pw_r - KW + 1            # 16
    PH, PW = OH // PKH, OW // PKW            # 8, 8
    Mo = N * PH * PW                         # 128 pooled pixels
    nu, nv = PKH + KH - 1, PKW + KW - 1      # 4, 4 -> 16 shared strided slabs
    nslab, nwin, ntap = nu * nv, PKH * PKW, KH * KW

    # ---- minimal XLA glue: pad + strided slabs (no im2col, no 6-D transpose) --
    xpad = jnp.pad(x_nchw.astype(jnp.float32),
                   ((0, 0), (0, 0), (ph_t, ph_b), (pw_l, pw_r)))
    slabs = []
    for u in range(nu):
        for v in range(nv):
            s = xpad[:, :, u:u + 2 * PH:2, v:v + 2 * PW:2]       # (N, C, PH, PW)
            slabs.append(s.transpose(1, 0, 2, 3).reshape(C, Mo)) # major-dim only
    S = jnp.stack(slabs, axis=0)                                  # (16, C, Mo)

    merges = []
    for dy in range(PKH):
        for dx in range(PKW):
            m = merge_nchw[:, :, dy:dy + 2 * PH:2, dx:dx + 2 * PW:2]
            merges.append(m.transpose(1, 0, 2, 3).reshape(OC, Mo))
    M4 = jnp.stack(merges, axis=0).astype(jnp.float32)            # (4, OC, Mo)

    Wt = conv_weight.transpose(2, 3, 0, 1).reshape(ntap, OC, C).astype(jnp.float32)
    bias_col = conv_bias.reshape(OC, 1).astype(jnp.float32)

    if use_bf16_matmul:
        # MXU-operand-only cast (v5e/v6e); elementwise + accumulation stay f32.
        S = S.astype(jnp.bfloat16)
        Wt = Wt.astype(jnp.bfloat16)

    # Lane tiling over pooled pixels; this instance runs as grid=(1,).
    Mo_pad = pl.cdiv(Mo, 128) * 128
    tm = min(Mo_pad, 512)
    Mo_pad = pl.cdiv(Mo_pad, tm) * tm
    if Mo_pad != Mo:
        S = jnp.pad(S, ((0, 0), (0, 0), (0, Mo_pad - Mo)))
        M4 = jnp.pad(M4, ((0, 0), (0, 0), (0, Mo_pad - Mo)))

    def kernel(s_ref, w_ref, b_ref, m_ref, o_ref):
        # s_ref: (16, C, tm)  shared strided input slabs (pooled pixels on lanes)
        # w_ref: (9, OC, C)   conv weight taps
        # b_ref: (OC, 1)      conv bias (lane-broadcast)
        # m_ref: (4, OC, tm)  merge input grouped by pool-window element dy*2+dx
        # o_ref: (OC, tm)     pooled output (lane-dense full-vreg store)
        taps = [w_ref[kk] for kk in range(ntap)]
        slab = [s_ref[i] for i in range(nslab)]
        best = None
        for dy in range(PKH):                       # static unroll: 2x2 window
            for dx in range(PKW):
                acc = m_ref[dy * PKW + dx]          # start from merge (f32)
                for kh in range(KH):                # 9 conv taps
                    for kw in range(KW):
                        acc = acc + jnp.dot(
                            taps[kh * KW + kw],
                            slab[(dy + kh) * nv + (dx + kw)],
                            preferred_element_type=jnp.float32)
                best = acc if best is None else jnp.maximum(best, acc)  # MaxPool
        # bias hoisted out of the window loop; Relu commutes with max
        o_ref[...] = jnp.maximum(best + b_ref[...], 0.0)

    pooled = pl.pallas_call(
        kernel,
        out_shape=jax.ShapeDtypeStruct((OC, Mo_pad), jnp.float32),
        grid=(Mo_pad // tm,),
        in_specs=[
            pl.BlockSpec((nslab, C, tm), lambda i: (0, 0, i)),
            pl.BlockSpec((ntap, OC, C), lambda i: (0, 0, 0)),
            pl.BlockSpec((OC, 1), lambda i: (0, 0)),
            pl.BlockSpec((nwin, OC, tm), lambda i: (0, 0, i)),
        ],
        out_specs=pl.BlockSpec((OC, tm), lambda i: (0, i)),
        compiler_params=pltpu.CompilerParams(
            dimension_semantics=("parallel",)),
    )(S, Wt, bias_col, M4)

    out = pooled[:, :Mo].reshape(OC, N, PH, PW).transpose(1, 0, 2, 3)  # -> NCHW
    return out


def _reference(x, merge, w, b):
    y = lax.conv_general_dilated(
        x, w, window_strides=(1, 1), padding=[(1, 1), (1, 1)],
        dimension_numbers=("NCHW", "OIHW", "NCHW"))
    y = y + b.reshape(1, -1, 1, 1) + merge
    y = jnp.maximum(y, 0.0)
    y = lax.reduce_window(y, -jnp.inf, lax.max,
                          (1, 1, 2, 2), (1, 1, 2, 2), "VALID")
    return y


if __name__ == "__main__":
    key = jax.random.PRNGKey(0)
    k1, k2, k3, k4 = jax.random.split(key, 4)
    x = jax.random.normal(k1, (2, 4, 16, 16), jnp.float32)        # cast_in (NCHW)
    merge = jax.random.normal(k2, (2, 8, 16, 16), jnp.float32)    # merge_in (NCHW)
    conv_weight = jax.random.normal(k3, (8, 4, 3, 3), jnp.float32) * 0.1
    conv_bias = jax.random.normal(k4, (8,), jnp.float32)

    fwd = jax.jit(tile_task_forward)
    out = jax.block_until_ready(fwd(x, merge, conv_weight, conv_bias))

    ref = _reference(x, merge, conv_weight, conv_bias)
    assert out.shape == ref.shape == (2, 8, 8, 8), out.shape
    assert jnp.allclose(out, ref, atol=1e-4, rtol=1e-4), \
        float(jnp.max(jnp.abs(out - ref)))
    print("KERNEL_OK")
</pallas_src>

<mosaic_0001>
module attributes {stable_mosaic.version = 11 : i64} {
  func.func @kernel(%arg0: i32, %arg1: memref<16x4x128xf32, #tpu.memory_space<vmem>>, %arg2: memref<9x8x4xf32, #tpu.memory_space<vmem>>, %arg3: memref<8x1xf32, #tpu.memory_space<vmem>>, %arg4: memref<4x8x128xf32, #tpu.memory_space<vmem>>, %arg5: memref<8x128xf32, #tpu.memory_space<vmem>>) attributes {dimension_semantics = [#tpu.dimension_semantics<parallel>], iteration_bounds = array<i64: 1>, scalar_prefetch = 0 : i64, scratch_operands = 0 : i64, tpu.core_type = #tpu.core_type<tc>, window_params = [{transform_indices = @transform_0, window_bounds = array<i64: 16, 4, 128>}, {pipeline_mode = #tpu.pipeline_mode<synchronous>, transform_indices = @transform_1, window_bounds = array<i64: 9, 8, 4>}, {pipeline_mode = #tpu.pipeline_mode<synchronous>, transform_indices = @transform_2, window_bounds = array<i64: 8, 1>}, {transform_indices = @transform_3, window_bounds = array<i64: 4, 8, 128>}, {transform_indices = @transform_4, window_bounds = array<i64: 8, 128>}]} {
    %c0 = arith.constant 0 : index
    %c0_0 = arith.constant 0 : index
    %c0_1 = arith.constant 0 : index
    %0 = vector.load %arg2[%c0, %c0_0, %c0_1] : memref<9x8x4xf32, #tpu.memory_space<vmem>>, vector<1x8x4xf32>
    %1 = vector.shape_cast %0 : vector<1x8x4xf32> to vector<8x4xf32>
    %c1 = arith.constant 1 : index
    %c0_2 = arith.constant 0 : index
    %c0_3 = arith.constant 0 : index
    %2 = vector.load %arg2[%c1, %c0_2, %c0_3] : memref<9x8x4xf32, #tpu.memory_space<vmem>>, vector<1x8x4xf32>
    %3 = vector.shape_cast %2 : vector<1x8x4xf32> to vector<8x4xf32>
    %c2 = arith.constant 2 : index
    %c0_4 = arith.constant 0 : index
    %c0_5 = arith.constant 0 : index
    %4 = vector.load %arg2[%c2, %c0_4, %c0_5] : memref<9x8x4xf32, #tpu.memory_space<vmem>>, vector<1x8x4xf32>
    %5 = vector.shape_cast %4 : vector<1x8x4xf32> to vector<8x4xf32>
    %c3 = arith.constant 3 : index
    %c0_6 = arith.constant 0 : index
    %c0_7 = arith.constant 0 : index
    %6 = vector.load %arg2[%c3, %c0_6, %c0_7] : memref<9x8x4xf32, #tpu.memory_space<vmem>>, vector<1x8x4xf32>
    %7 = vector.shape_cast %6 : vector<1x8x4xf32> to vector<8x4xf32>
    %c4 = arith.constant 4 : index
    %c0_8 = arith.constant 0 : index
    %c0_9 = arith.constant 0 : index
    %8 = vector.load %arg2[%c4, %c0_8, %c0_9] : memref<9x8x4xf32, #tpu.memory_space<vmem>>, vector<1x8x4xf32>
    %9 = vector.shape_cast %8 : vector<1x8x4xf32> to vector<8x4xf32>
    %c5 = arith.constant 5 : index
    %c0_10 = arith.constant 0 : index
    %c0_11 = arith.constant 0 : index
    %10 = vector.load %arg2[%c5, %c0_10, %c0_11] : memref<9x8x4xf32, #tpu.memory_space<vmem>>, vector<1x8x4xf32>
    %11 = vector.shape_cast %10 : vector<1x8x4xf32> to vector<8x4xf32>
    %c6 = arith.constant 6 : index
    %c0_12 = arith.constant 0 : index
    %c0_13 = arith.constant 0 : index
    %12 = vector.load %arg2[%c6, %c0_12, %c0_13] : memref<9x8x4xf32, #tpu.memory_space<vmem>>, vector<1x8x4xf32>
    %13 = vector.shape_cast %12 : vector<1x8x4xf32> to vector<8x4xf32>
    %c7 = arith.constant 7 : index
    %c0_14 = arith.constant 0 : index
    %c0_15 = arith.constant 0 : index
    %14 = vector.load %arg2[%c7, %c0_14, %c0_15] : memref<9x8x4xf32, #tpu.memory_space<vmem>>, vector<1x8x4xf32>
    %15 = vector.shape_cast %14 : vector<1x8x4xf32> to vector<8x4xf32>
    %c8 = arith.constant 8 : index
    %c0_16 = arith.constant 0 : index
    %c0_17 = arith.constant 0 : index
    %16 = vector.load %arg2[%c8, %c0_16, %c0_17] : memref<9x8x4xf32, #tpu.memory_space<vmem>>, vector<1x8x4xf32>
    %17 = vector.shape_cast %16 : vector<1x8x4xf32> to vector<8x4xf32>
    %c0_18 = arith.constant 0 : index
    %c0_19 = arith.constant 0 : index
    %c0_20 = arith.constant 0 : index
    %18 = vector.load %arg1[%c0_18, %c0_19, %c0_20] : memref<16x4x128xf32, #tpu.memory_space<vmem>>, vector<1x4x128xf32>
    %19 = vector.shape_cast %18 : vector<1x4x128xf32> to vector<4x128xf32>
    %c1_21 = arith.constant 1 : index
    %c0_22 = arith.constant 0 : index
    %c0_23 = arith.constant 0 : index
    %20 = vector.load %arg1[%c1_21, %c0_22, %c0_23] : memref<16x4x128xf32, #tpu.memory_space<vmem>>, vector<1x4x128xf32>
    %21 = vector.shape_cast %20 : vector<1x4x128xf32> to vector<4x128xf32>
    %c2_24 = arith.constant 2 : index
    %c0_25 = arith.constant 0 : index
    %c0_26 = arith.constant 0 : index
    %22 = vector.load %arg1[%c2_24, %c0_25, %c0_26] : memref<16x4x128xf32, #tpu.memory_space<vmem>>, vector<1x4x128xf32>
    %23 = vector.shape_cast %22 : vector<1x4x128xf32> to vector<4x128xf32>
    %c3_27 = arith.constant 3 : index
    %c0_28 = arith.constant 0 : index
    %c0_29 = arith.constant 0 : index
    %24 = vector.load %arg1[%c3_27, %c0_28, %c0_29] : memref<16x4x128xf32, #tpu.memory_space<vmem>>, vector<1x4x128xf32>
    %25 = vector.shape_cast %24 : vector<1x4x128xf32> to vector<4x128xf32>
    %c4_30 = arith.constant 4 : index
    %c0_31 = arith.constant 0 : index
    %c0_32 = arith.constant 0 : index
    %26 = vector.load %arg1[%c4_30, %c0_31, %c0_32] : memref<16x4x128xf32, #tpu.memory_space<vmem>>, vector<1x4x128xf32>
    %27 = vector.shape_cast %26 : vector<1x4x128xf32> to vector<4x128xf32>
    %c5_33 = arith.constant 5 : index
    %c0_34 = arith.constant 0 : index
    %c0_35 = arith.constant 0 : index
    %28 = vector.load %arg1[%c5_33, %c0_34, %c0_35] : memref<16x4x128xf32, #tpu.memory_space<vmem>>, vector<1x4x128xf32>
    %29 = vector.shape_cast %28 : vector<1x4x128xf32> to vector<4x128xf32>
    %c6_36 = arith.constant 6 : index
    %c0_37 = arith.constant 0 : index
    %c0_38 = arith.constant 0 : index
    %30 = vector.load %arg1[%c6_36, %c0_37, %c0_38] : memref<16x4x128xf32, #tpu.memory_space<vmem>>, vector<1x4x128xf32>
    %31 = vector.shape_cast %30 : vector<1x4x128xf32> to vector<4x128xf32>
    %c7_39 = arith.constant 7 : index
    %c0_40 = arith.constant 0 : index
    %c0_41 = arith.constant 0 : index
    %32 = vector.load %arg1[%c7_39, %c0_40, %c0_41] : memref<16x4x128xf32, #tpu.memory_space<vmem>>, vector<1x4x128xf32>
    %33 = vector.shape_cast %32 : vector<1x4x128xf32> to vector<4x128xf32>
    %c8_42 = arith.constant 8 : index
    %c0_43 = arith.constant 0 : index
    %c0_44 = arith.constant 0 : index
    %34 = vector.load %arg1[%c8_42, %c0_43, %c0_44] : memref<16x4x128xf32, #tpu.memory_space<vmem>>, vector<1x4x128xf32>
    %35 = vector.shape_cast %34 : vector<1x4x128xf32> to vector<4x128xf32>
    %c9 = arith.constant 9 : index
    %c0_45 = arith.constant 0 : index
    %c0_46 = arith.constant 0 : index
    %36 = vector.load %arg1[%c9, %c0_45, %c0_46] : memref<16x4x128xf32, #tpu.memory_space<vmem>>, vector<1x4x128xf32>
    %37 = vector.shape_cast %36 : vector<1x4x128xf32> to vector<4x128xf32>
    %c10 = arith.constant 10 : index
    %c0_47 = arith.constant 0 : index
    %c0_48 = arith.constant 0 : index
    %38 = vector.load %arg1[%c10, %c0_47, %c0_48] : memref<16x4x128xf32, #tpu.memory_space<vmem>>, vector<1x4x128xf32>
    %39 = vector.shape_cast %38 : vector<1x4x128xf32> to vector<4x128xf32>
    %c11 = arith.constant 11 : index
    %c0_49 = arith.constant 0 : index
    %c0_50 = arith.constant 0 : index
    %40 = vector.load %arg1[%c11, %c0_49, %c0_50] : memref<16x4x128xf32, #tpu.memory_space<vmem>>, vector<1x4x128xf32>
    %41 = vector.shape_cast %40 : vector<1x4x128xf32> to vector<4x128xf32>
    %c12 = arith.constant 12 : index
    %c0_51 = arith.constant 0 : index
    %c0_52 = arith.constant 0 : index
    %42 = vector.load %arg1[%c12, %c0_51, %c0_52] : memref<16x4x128xf32, #tpu.memory_space<vmem>>, vector<1x4x128xf32>
    %43 = vector.shape_cast %42 : vector<1x4x128xf32> to vector<4x128xf32>
    %c13 = arith.constant 13 : index
    %c0_53 = arith.constant 0 : index
    %c0_54 = arith.constant 0 : index
    %44 = vector.load %arg1[%c13, %c0_53, %c0_54] : memref<16x4x128xf32, #tpu.memory_space<vmem>>, vector<1x4x128xf32>
    %45 = vector.shape_cast %44 : vector<1x4x128xf32> to vector<4x128xf32>
    %c14 = arith.constant 14 : index
    %c0_55 = arith.constant 0 : index
    %c0_56 = arith.constant 0 : index
    %46 = vector.load %arg1[%c14, %c0_55, %c0_56] : memref<16x4x128xf32, #tpu.memory_space<vmem>>, vector<1x4x128xf32>
    %47 = vector.shape_cast %46 : vector<1x4x128xf32> to vector<4x128xf32>
    %c15 = arith.constant 15 : index
    %c0_57 = arith.constant 0 : index
    %c0_58 = arith.constant 0 : index
    %48 = vector.load %arg1[%c15, %c0_57, %c0_58] : memref<16x4x128xf32, #tpu.memory_space<vmem>>, vector<1x4x128xf32>
    %49 = vector.shape_cast %48 : vector<1x4x128xf32> to vector<4x128xf32>
    %c0_59 = arith.constant 0 : index
    %c0_60 = arith.constant 0 : index
    %c0_61 = arith.constant 0 : index
    %50 = vector.load %arg4[%c0_59, %c0_60, %c0_61] : memref<4x8x128xf32, #tpu.memory_space<vmem>>, vector<1x8x128xf32>
    %51 = vector.shape_cast %50 : vector<1x8x128xf32> to vector<8x128xf32>
    %cst = arith.constant dense<0.000000e+00> : vector<8x128xf32>
    %52 = tpu.matmul %1, %19, %cst {dimension_numbers = #tpu.dot_dimension_numbers<[1], [0], [0], [1], [0, 0, 1, 1], [], []>} : vector<8x4xf32>, vector<4x128xf32>, vector<8x128xf32> -> vector<8x128xf32>
    %53 = arith.addf %51, %52 : vector<8x128xf32>
    %cst_62 = arith.constant dense<0.000000e+00> : vector<8x128xf32>
    %54 = tpu.matmul %3, %21, %cst_62 {dimension_numbers = #tpu.dot_dimension_numbers<[1], [0], [0], [1], [0, 0, 1, 1], [], []>} : vector<8x4xf32>, vector<4x128xf32>, vector<8x128xf32> -> vector<8x128xf32>
    %55 = arith.addf %53, %54 : vector<8x128xf32>
    %cst_63 = arith.constant dense<0.000000e+00> : vector<8x128xf32>
    %56 = tpu.matmul %5, %23, %cst_63 {dimension_numbers = #tpu.dot_dimension_numbers<[1], [0], [0], [1], [0, 0, 1, 1], [], []>} : vector<8x4xf32>, vector<4x128xf32>, vector<8x128xf32> -> vector<8x128xf32>
    %57 = arith.addf %55, %56 : vector<8x128xf32>
    %cst_64 = arith.constant dense<0.000000e+00> : vector<8x128xf32>
    %58 = tpu.matmul %7, %27, %cst_64 {dimension_numbers = #tpu.dot_dimension_numbers<[1], [0], [0], [1], [0, 0, 1, 1], [], []>} : vector<8x4xf32>, vector<4x128xf32>, vector<8x128xf32> -> vector<8x128xf32>
    %59 = arith.addf %57, %58 : vector<8x128xf32>
    %cst_65 = arith.constant dense<0.000000e+00> : vector<8x128xf32>
    %60 = tpu.matmul %9, %29, %cst_65 {dimension_numbers = #tpu.dot_dimension_numbers<[1], [0], [0], [1], [0, 0, 1, 1], [], []>} : vector<8x4xf32>, vector<4x128xf32>, vector<8x128xf32> -> vector<8x128xf32>
    %61 = arith.addf %59, %60 : vector<8x128xf32>
    %cst_66 = arith.constant dense<0.000000e+00> : vector<8x128xf32>
    %62 = tpu.matmul %11, %31, %cst_66 {dimension_numbers = #tpu.dot_dimension_numbers<[1], [0], [0], [1], [0, 0, 1, 1], [], []>} : vector<8x4xf32>, vector<4x128xf32>, vector<8x128xf32> -> vector<8x128xf32>
    %63 = arith.addf %61, %62 : vector<8x128xf32>
    %cst_67 = arith.constant dense<0.000000e+00> : vector<8x128xf32>
    %64 = tpu.matmul %13, %35, %cst_67 {dimension_numbers = #tpu.dot_dimension_numbers<[1], [0], [0], [1], [0, 0, 1, 1], [], []>} : vector<8x4xf32>, vector<4x128xf32>, vector<8x128xf32> -> vector<8x128xf32>
    %65 = arith.addf %63, %64 : vector<8x128xf32>
    %cst_68 = arith.constant dense<0.000000e+00> : vector<8x128xf32>
    %66 = tpu.matmul %15, %37, %cst_68 {dimension_numbers = #tpu.dot_dimension_numbers<[1], [0], [0], [1], [0, 0, 1, 1], [], []>} : vector<8x4xf32>, vector<4x128xf32>, vector<8x128xf32> -> vector<8x128xf32>
    %67 = arith.addf %65, %66 : vector<8x128xf32>
    %cst_69 = arith.constant dense<0.000000e+00> : vector<8x128xf32>
    %68 = tpu.matmul %17, %39, %cst_69 {dimension_numbers = #tpu.dot_dimension_numbers<[1], [0], [0], [1], [0, 0, 1, 1], [], []>} : vector<8x4xf32>, vector<4x128xf32>, vector<8x128xf32> -> vector<8x128xf32>
    %69 = arith.addf %67, %68 : vector<8x128xf32>
    %c1_70 = arith.constant 1 : index
    %c0_71 = arith.constant 0 : index
    %c0_72 = arith.constant 0 : index
    %70 = vector.load %arg4[%c1_70, %c0_71, %c0_72] : memref<4x8x128xf32, #tpu.memory_space<vmem>>, vector<1x8x128xf32>
    %71 = vector.shape_cast %70 : vector<1x8x128xf32> to vector<8x128xf32>
    %cst_73 = arith.constant dense<0.000000e+00> : vector<8x128xf32>
    %72 = tpu.matmul %1, %21, %cst_73 {dimension_numbers = #tpu.dot_dimension_numbers<[1], [0], [0], [1], [0, 0, 1, 1], [], []>} : vector<8x4xf32>, vector<4x128xf32>, vector<8x128xf32> -> vector<8x128xf32>
    %73 = arith.addf %71, %72 : vector<8x128xf32>
    %cst_74 = arith.constant dense<0.000000e+00> : vector<8x128xf32>
    %74 = tpu.matmul %3, %23, %cst_74 {dimension_numbers = #tpu.dot_dimension_numbers<[1], [0], [0], [1], [0, 0, 1, 1], [], []>} : vector<8x4xf32>, vector<4x128xf32>, vector<8x128xf32> -> vector<8x128xf32>
    %75 = arith.addf %73, %74 : vector<8x128xf32>
    %cst_75 = arith.constant dense<0.000000e+00> : vector<8x128xf32>
    %76 = tpu.matmul %5, %25, %cst_75 {dimension_numbers = #tpu.dot_dimension_numbers<[1], [0], [0], [1], [0, 0, 1, 1], [], []>} : vector<8x4xf32>, vector<4x128xf32>, vector<8x128xf32> -> vector<8x128xf32>
    %77 = arith.addf %75, %76 : vector<8x128xf32>
    %cst_76 = arith.constant dense<0.000000e+00> : vector<8x128xf32>
    %78 = tpu.matmul %7, %29, %cst_76 {dimension_numbers = #tpu.dot_dimension_numbers<[1], [0], [0], [1], [0, 0, 1, 1], [], []>} : vector<8x4xf32>, vector<4x128xf32>, vector<8x128xf32> -> vector<8x128xf32>
    %79 = arith.addf %77, %78 : vector<8x128xf32>
    %cst_77 = arith.constant dense<0.000000e+00> : vector<8x128xf32>
    %80 = tpu.matmul %9, %31, %cst_77 {dimension_numbers = #tpu.dot_dimension_numbers<[1], [0], [0], [1], [0, 0, 1, 1], [], []>} : vector<8x4xf32>, vector<4x128xf32>, vector<8x128xf32> -> vector<8x128xf32>
    %81 = arith.addf %79, %80 : vector<8x128xf32>
    %cst_78 = arith.constant dense<0.000000e+00> : vector<8x128xf32>
    %82 = tpu.matmul %11, %33, %cst_78 {dimension_numbers = #tpu.dot_dimension_numbers<[1], [0], [0], [1], [0, 0, 1, 1], [], []>} : vector<8x4xf32>, vector<4x128xf32>, vector<8x128xf32> -> vector<8x128xf32>
    %83 = arith.addf %81, %82 : vector<8x128xf32>
    %cst_79 = arith.constant dense<0.000000e+00> : vector<8x128xf32>
    %84 = tpu.matmul %13, %37, %cst_79 {dimension_numbers = #tpu.dot_dimension_numbers<[1], [0], [0], [1], [0, 0, 1, 1], [], []>} : vector<8x4xf32>, vector<4x128xf32>, vector<8x128xf32> -> vector<8x128xf32>
    %85 = arith.addf %83, %84 : vector<8x128xf32>
    %cst_80 = arith.constant dense<0.000000e+00> : vector<8x128xf32>
    %86 = tpu.matmul %15, %39, %cst_80 {dimension_numbers = #tpu.dot_dimension_numbers<[1], [0], [0], [1], [0, 0, 1, 1], [], []>} : vector<8x4xf32>, vector<4x128xf32>, vector<8x128xf32> -> vector<8x128xf32>
    %87 = arith.addf %85, %86 : vector<8x128xf32>
    %cst_81 = arith.constant dense<0.000000e+00> : vector<8x128xf32>
    %88 = tpu.matmul %17, %41, %cst_81 {dimension_numbers = #tpu.dot_dimension_numbers<[1], [0], [0], [1], [0, 0, 1, 1], [], []>} : vector<8x4xf32>, vector<4x128xf32>, vector<8x128xf32> -> vector<8x128xf32>
    %89 = arith.addf %87, %88 : vector<8x128xf32>
    %90 = arith.maximumf %69, %89 : vector<8x128xf32>
    %c2_82 = arith.constant 2 : index
    %c0_83 = arith.constant 0 : index
    %c0_84 = arith.constant 0 : index
    %91 = vector.load %arg4[%c2_82, %c0_83, %c0_84] : memref<4x8x128xf32, #tpu.memory_space<vmem>>, vector<1x8x128xf32>
    %92 = vector.shape_cast %91 : vector<1x8x128xf32> to vector<8x128xf32>
    %cst_85 = arith.constant dense<0.000000e+00> : vector<8x128xf32>
    %93 = tpu.matmul %1, %27, %cst_85 {dimension_numbers = #tpu.dot_dimension_numbers<[1], [0], [0], [1], [0, 0, 1, 1], [], []>} : vector<8x4xf32>, vector<4x128xf32>, vector<8x128xf32> -> vector<8x128xf32>
    %94 = arith.addf %92, %93 : vector<8x128xf32>
    %cst_86 = arith.constant dense<0.000000e+00> : vector<8x128xf32>
    %95 = tpu.matmul %3, %29, %cst_86 {dimension_numbers = #tpu.dot_dimension_numbers<[1], [0], [0], [1], [0, 0, 1, 1], [], []>} : vector<8x4xf32>, vector<4x128xf32>, vector<8x128xf32> -> vector<8x128xf32>
    %96 = arith.addf %94, %95 : vector<8x128xf32>
    %cst_87 = arith.constant dense<0.000000e+00> : vector<8x128xf32>
    %97 = tpu.matmul %5, %31, %cst_87 {dimension_numbers = #tpu.dot_dimension_numbers<[1], [0], [0], [1], [0, 0, 1, 1], [], []>} : vector<8x4xf32>, vector<4x128xf32>, vector<8x128xf32> -> vector<8x128xf32>
    %98 = arith.addf %96, %97 : vector<8x128xf32>
    %cst_88 = arith.constant dense<0.000000e+00> : vector<8x128xf32>
    %99 = tpu.matmul %7, %35, %cst_88 {dimension_numbers = #tpu.dot_dimension_numbers<[1], [0], [0], [1], [0, 0, 1, 1], [], []>} : vector<8x4xf32>, vector<4x128xf32>, vector<8x128xf32> -> vector<8x128xf32>
    %100 = arith.addf %98, %99 : vector<8x128xf32>
    %cst_89 = arith.constant dense<0.000000e+00> : vector<8x128xf32>
    %101 = tpu.matmul %9, %37, %cst_89 {dimension_numbers = #tpu.dot_dimension_numbers<[1], [0], [0], [1], [0, 0, 1, 1], [], []>} : vector<8x4xf32>, vector<4x128xf32>, vector<8x128xf32> -> vector<8x128xf32>
    %102 = arith.addf %100, %101 : vector<8x128xf32>
    %cst_90 = arith.constant dense<0.000000e+00> : vector<8x128xf32>
    %103 = tpu.matmul %11, %39, %cst_90 {dimension_numbers = #tpu.dot_dimension_numbers<[1], [0], [0], [1], [0, 0, 1, 1], [], []>} : vector<8x4xf32>, vector<4x128xf32>, vector<8x128xf32> -> vector<8x128xf32>
    %104 = arith.addf %102, %103 : vector<8x128xf32>
    %cst_91 = arith.constant dense<0.000000e+00> : vector<8x128xf32>
    %105 = tpu.matmul %13, %43, %cst_91 {dimension_numbers = #tpu.dot_dimension_numbers<[1], [0], [0], [1], [0, 0, 1, 1], [], []>} : vector<8x4xf32>, vector<4x128xf32>, vector<8x128xf32> -> vector<8x128xf32>
    %106 = arith.addf %104, %105 : vector<8x128xf32>
    %cst_92 = arith.constant dense<0.000000e+00> : vector<8x128xf32>
    %107 = tpu.matmul %15, %45, %cst_92 {dimension_numbers = #tpu.dot_dimension_numbers<[1], [0], [0], [1], [0, 0, 1, 1], [], []>} : vector<8x4xf32>, vector<4x128xf32>, vector<8x128xf32> -> vector<8x128xf32>
    %108 = arith.addf %106, %107 : vector<8x128xf32>
    %cst_93 = arith.constant dense<0.000000e+00> : vector<8x128xf32>
    %109 = tpu.matmul %17, %47, %cst_93 {dimension_numbers = #tpu.dot_dimension_numbers<[1], [0], [0], [1], [0, 0, 1, 1], [], []>} : vector<8x4xf32>, vector<4x128xf32>, vector<8x128xf32> -> vector<8x128xf32>
    %110 = arith.addf %108, %109 : vector<8x128xf32>
    %111 = arith.maximumf %90, %110 : vector<8x128xf32>
    %c3_94 = arith.constant 3 : index
    %c0_95 = arith.constant 0 : index
    %c0_96 = arith.constant 0 : index
    %112 = vector.load %arg4[%c3_94, %c0_95, %c0_96] : memref<4x8x128xf32, #tpu.memory_space<vmem>>, vector<1x8x128xf32>
    %113 = vector.shape_cast %112 : vector<1x8x128xf32> to vector<8x128xf32>
    %cst_97 = arith.constant dense<0.000000e+00> : vector<8x128xf32>
    %114 = tpu.matmul %1, %29, %cst_97 {dimension_numbers = #tpu.dot_dimension_numbers<[1], [0], [0], [1], [0, 0, 1, 1], [], []>} : vector<8x4xf32>, vector<4x128xf32>, vector<8x128xf32> -> vector<8x128xf32>
    %115 = arith.addf %113, %114 : vector<8x128xf32>
    %cst_98 = arith.constant dense<0.000000e+00> : vector<8x128xf32>
    %116 = tpu.matmul %3, %31, %cst_98 {dimension_numbers = #tpu.dot_dimension_numbers<[1], [0], [0], [1], [0, 0, 1, 1], [], []>} : vector<8x4xf32>, vector<4x128xf32>, vector<8x128xf32> -> vector<8x128xf32>
    %117 = arith.addf %115, %116 : vector<8x128xf32>
    %cst_99 = arith.constant dense<0.000000e+00> : vector<8x128xf32>
    %118 = tpu.matmul %5, %33, %cst_99 {dimension_numbers = #tpu.dot_dimension_numbers<[1], [0], [0], [1], [0, 0, 1, 1], [], []>} : vector<8x4xf32>, vector<4x128xf32>, vector<8x128xf32> -> vector<8x128xf32>
    %119 = arith.addf %117, %118 : vector<8x128xf32>
    %cst_100 = arith.constant dense<0.000000e+00> : vector<8x128xf32>
    %120 = tpu.matmul %7, %37, %cst_100 {dimension_numbers = #tpu.dot_dimension_numbers<[1], [0], [0], [1], [0, 0, 1, 1], [], []>} : vector<8x4xf32>, vector<4x128xf32>, vector<8x128xf32> -> vector<8x128xf32>
    %121 = arith.addf %119, %120 : vector<8x128xf32>
    %cst_101 = arith.constant dense<0.000000e+00> : vector<8x128xf32>
    %122 = tpu.matmul %9, %39, %cst_101 {dimension_numbers = #tpu.dot_dimension_numbers<[1], [0], [0], [1], [0, 0, 1, 1], [], []>} : vector<8x4xf32>, vector<4x128xf32>, vector<8x128xf32> -> vector<8x128xf32>
    %123 = arith.addf %121, %122 : vector<8x128xf32>
    %cst_102 = arith.constant dense<0.000000e+00> : vector<8x128xf32>
    %124 = tpu.matmul %11, %41, %cst_102 {dimension_numbers = #tpu.dot_dimension_numbers<[1], [0], [0], [1], [0, 0, 1, 1], [], []>} : vector<8x4xf32>, vector<4x128xf32>, vector<8x128xf32> -> vector<8x128xf32>
    %125 = arith.addf %123, %124 : vector<8x128xf32>
    %cst_103 = arith.constant dense<0.000000e+00> : vector<8x128xf32>
    %126 = tpu.matmul %13, %45, %cst_103 {dimension_numbers = #tpu.dot_dimension_numbers<[1], [0], [0], [1], [0, 0, 1, 1], [], []>} : vector<8x4xf32>, vector<4x128xf32>, vector<8x128xf32> -> vector<8x128xf32>
    %127 = arith.addf %125, %126 : vector<8x128xf32>
    %cst_104 = arith.constant dense<0.000000e+00> : vector<8x128xf32>
    %128 = tpu.matmul %15, %47, %cst_104 {dimension_numbers = #tpu.dot_dimension_numbers<[1], [0], [0], [1], [0, 0, 1, 1], [], []>} : vector<8x4xf32>, vector<4x128xf32>, vector<8x128xf32> -> vector<8x128xf32>
    %129 = arith.addf %127, %128 : vector<8x128xf32>
    %cst_105 = arith.constant dense<0.000000e+00> : vector<8x128xf32>
    %130 = tpu.matmul %17, %49, %cst_105 {dimension_numbers = #tpu.dot_dimension_numbers<[1], [0], [0], [1], [0, 0, 1, 1], [], []>} : vector<8x4xf32>, vector<4x128xf32>, vector<8x128xf32> -> vector<8x128xf32>
    %131 = arith.addf %129, %130 : vector<8x128xf32>
    %132 = arith.maximumf %111, %131 : vector<8x128xf32>
    %c0_106 = arith.constant 0 : index
    %c0_107 = arith.constant 0 : index
    %133 = vector.load %arg3[%c0_106, %c0_107] : memref<8x1xf32, #tpu.memory_space<vmem>>, vector<8x1xf32>
    %134 = vector.broadcast %133 : vector<8x1xf32> to vector<8x128xf32>
    %135 = arith.addf %132, %134 : vector<8x128xf32>
    %cst_108 = arith.constant 0.000000e+00 : f32
    %136 = vector.broadcast %cst_108 : f32 to vector<8x128xf32>
    %137 = arith.maximumf %135, %136 : vector<8x128xf32>
    %c0_109 = arith.constant 0 : index
    %c0_110 = arith.constant 0 : index
    %138 = vector.load %arg5[%c0_109, %c0_110] : memref<8x128xf32, #tpu.memory_space<vmem>>, vector<8x128xf32>
    tpu.vector_store %arg5[%c0_109, %c0_110], %137 {strides = array<i32>} : memref<8x128xf32, #tpu.memory_space<vmem>>, vector<8x128xf32>,
    return
  }
  func.func @transform_0(%arg0: i32) -> (i32, i32, i32) {
    %c0_i32 = arith.constant 0 : i32
    %c0_i32_0 = arith.constant 0 : i32
    %c0_i32_1 = arith.constant 0 : i32
    return %c0_i32, %c0_i32_0, %arg0 : i32, i32, i32
  }
  func.func @transform_1(%arg0: i32) -> (i32, i32, i32) {
    %c0_i32 = arith.constant 0 : i32
    %c0_i32_0 = arith.constant 0 : i32
    %c0_i32_1 = arith.constant 0 : i32
    %c0_i32_2 = arith.constant 0 : i32
    return %c0_i32, %c0_i32_0, %c0_i32_1 : i32, i32, i32
  }
  func.func @transform_2(%arg0: i32) -> (i32, i32) {
    %c0_i32 = arith.constant 0 : i32
    %c0_i32_0 = arith.constant 0 : i32
    %c0_i32_1 = arith.constant 0 : i32
    return %c0_i32, %c0_i32_0 : i32, i32
  }
  func.func @transform_3(%arg0: i32) -> (i32, i32, i32) {
    %c0_i32 = arith.constant 0 : i32
    %c0_i32_0 = arith.constant 0 : i32
    %c0_i32_1 = arith.constant 0 : i32
    return %c0_i32, %c0_i32_0, %arg0 : i32, i32, i32
  }
  func.func @transform_4(%arg0: i32) -> (i32, i32) {
    %c0_i32 = arith.constant 0 : i32
    %c0_i32_0 = arith.constant 0 : i32
    return %c0_i32, %arg0 : i32, i32
  }
}

</mosaic_0001>

<llo_original>
// kernel: tile_task_forward.1
$region0: #{tile_task_forward.1}
  #allocation0 [shape = 'u32[]', space=smem, size = 0x4, offset = 0x4, fixed_abs, tag = 'smem constant byte address 0x4 - core index']
  #allocation1 [shape = 'u32[144,128]{1,0:T(1,128)}', space=vmem, size = 0x12000, scoped, tag = 'internal scratch']
  %s0 = inlined_call_operand.vmem [shape: f32[16,4,128], index: 0, kind: input, shape index: {}]
  %s1 = inlined_call_operand.vmem [shape: f32[9,8,4], index: 1, kind: input, shape index: {}]
  %s2 = inlined_call_operand.vmem [shape: f32[8,1], index: 2, kind: input, shape index: {}]
  %s3 = inlined_call_operand.vmem [shape: f32[4,8,128], index: 3, kind: input, shape index: {}]
  %s4 = inlined_call_operand.vmem [shape: f32[8,128], index: 4, kind: output, shape index: {}]
  %s5 = sld [smem:[#allocation0]]
  $region26: #{tile_task_forward.1} parent=0
    _
  %s7 = ssub.s32 1, %s5
  %s8 = scalar_select 0, %s7, %s5
  // Predicated region
  $region2: #{tile_task_forward.1} parent=0 // pred_check
    _
  $region3: #{tile_task_forward.1} parent=0 // pred_check_branch
    %10 = sbr.rel (0) target = $region5
  $region4: #{tile_task_forward.1} parent=0 // pred_region
    _
  $region5: #{tile_task_forward.1} parent=0 // pred_fallthru
    _
  // Predicated region
  $region6: #{tile_task_forward.1} parent=0 // pred_check
    _
  $region7: #{tile_task_forward.1} parent=0 // pred_check_branch
    %12 = sbr.rel (0) target = $region9
  $region8: #{tile_task_forward.1} parent=0 // pred_region
    _
  $region9: #{tile_task_forward.1} parent=0 // pred_fallthru
    _
  // Predicated region
  $region10: #{tile_task_forward.1} parent=0 // pred_check
    _
  $region11: #{tile_task_forward.1} parent=0 // pred_check_branch
    %14 = sbr.rel (0) target = $region13
  $region12: #{tile_task_forward.1} parent=0 // pred_region
    _
  $region13: #{tile_task_forward.1} parent=0 // pred_fallthru
    _
  // Predicated region
  $region14: #{tile_task_forward.1} parent=0 // pred_check
    _
  $region15: #{tile_task_forward.1} parent=0 // pred_check_branch
    %16 = sbr.rel (0) target = $region17
  $region16: #{tile_task_forward.1} parent=0 // pred_region
    _
  $region17: #{tile_task_forward.1} parent=0 // pred_fallthru
    _
  %v17 = vld [vmem:[%s1] sm:$0xff]
  %s18 = scalar_lea.vmem %s1, 8
  %v19 = vld [vmem:[%s18] sm:$0xff]
  %s20 = scalar_lea.vmem %s1, 16
  %v21 = vld [vmem:[%s20] sm:$0xff]
  %s22 = scalar_lea.vmem %s1, 24
  %v23 = vld [vmem:[%s22] sm:$0xff]
  %s24 = scalar_lea.vmem %s1, 32
  %v25 = vld [vmem:[%s24] sm:$0xff]
  %s26 = scalar_lea.vmem %s1, 40
  %v27 = vld [vmem:[%s26] sm:$0xff]
  %s28 = scalar_lea.vmem %s1, 48
  %v29 = vld [vmem:[%s28] sm:$0xff]
  %s30 = scalar_lea.vmem %s1, 56
  %v31 = vld [vmem:[%s30] sm:$0xff]
  %s32 = scalar_lea.vmem %s1, 64
  %v33 = vld [vmem:[%s32] sm:$0xff]
  %v34 = vld [vmem:[%s0] sm:$0xf]
  %s35 = scalar_lea.vmem %s0, 4
  %v36 = vld [vmem:[%s35] sm:$0xf]
  %s37 = scalar_lea.vmem %s0, 8
  %v38 = vld [vmem:[%s37] sm:$0xf]
  %s39 = scalar_lea.vmem %s0, 12
  %v40 = vld [vmem:[%s39] sm:$0xf]
  %s41 = scalar_lea.vmem %s0, 16
  %v42 = vld [vmem:[%s41] sm:$0xf]
  %s43 = scalar_lea.vmem %s0, 20
  %v44 = vld [vmem:[%s43] sm:$0xf]
  %s45 = scalar_lea.vmem %s0, 24
  %v46 = vld [vmem:[%s45] sm:$0xf]
  %s47 = scalar_lea.vmem %s0, 28
  %v48 = vld [vmem:[%s47] sm:$0xf]
  %s49 = scalar_lea.vmem %s0, 32
  %v50 = vld [vmem:[%s49] sm:$0xf]
  %s51 = scalar_lea.vmem %s0, 36
  %v52 = vld [vmem:[%s51] sm:$0xf]
  %s53 = scalar_lea.vmem %s0, 40
  %v54 = vld [vmem:[%s53] sm:$0xf]
  %s55 = scalar_lea.vmem %s0, 44
  %v56 = vld [vmem:[%s55] sm:$0xf]
  %s57 = scalar_lea.vmem %s0, 48
  %v58 = vld [vmem:[%s57] sm:$0xf]
  %s59 = scalar_lea.vmem %s0, 52
  %v60 = vld [vmem:[%s59] sm:$0xf]
  %s61 = scalar_lea.vmem %s0, 56
  %v62 = vld [vmem:[%s61] sm:$0xf]
  %s63 = scalar_lea.vmem %s0, 60
  %v64 = vld [vmem:[%s63] sm:$0xf]
  %v65 = vld [vmem:[%s3] sm:$0xff]
  %vm66 = vcmask 31744
  %v68 = vsel %vm66, %v17, 0
  %vm70 = vcmask 1043456
  %v72 = vsel %vm70, %v34, 0
  %74 = vmatprep.subr.mxu0 0.0
  %75 = vmatpush1.msra.mxu0 %v72
  %76 = vmatprep.subr.mxu0 0.0
  %77 = vmatpush1.msra.mxu0 0.0
  %78 = vmatprep.subr.mxu0 0.0
  %79 = vmatpush1.msra.mxu0 0.0
  %80 = vmatprep.subr.mxu0 0.0
  %81 = vmatpush1.msra.mxu0 0.0
  %82 = vmatprep.subr.mxu0 0.0
  %83 = vmatpush1.msra.mxu0 0.0
  %84 = vmatprep.subr.mxu0 0.0
  %85 = vmatpush1.msra.mxu0 0.0
  %86 = vmatprep.subr.mxu0 0.0
  %87 = vmatpush1.msra.mxu0 0.0
  %88 = vmatprep.subr.mxu0 0.0
  %89 = vmatpush1.msra.mxu0 0.0
  %90 = vmatprep.subr.mxu0 0.0
  %91 = vmatpush1.msra.mxu0 0.0
  %92 = vmatprep.subr.mxu0 0.0
  %93 = vmatpush1.msra.mxu0 0.0
  %94 = vmatprep.subr.mxu0 0.0
  %95 = vmatpush1.msra.mxu0 0.0
  %96 = vmatprep.subr.mxu0 0.0
  %97 = vmatpush1.msra.mxu0 0.0
  %98 = vmatprep.subr.mxu0 0.0
  %99 = vmatpush1.msra.mxu0 0.0
  %100 = vmatprep.subr.mxu0 0.0
  %101 = vmatpush1.msra.mxu0 0.0
  %102 = vmatprep.subr.mxu0 0.0
  %103 = vmatpush1.msra.mxu0 0.0
  %104 = vmatprep.subr.mxu0 0.0
  %105 = vmatpush1.msra.mxu0 0.0
  %106 = vmatprep.subr.mxu0 0.0
  %107 = vmatpush1.msra.mxu0 0.0
  %108 = vmatprep.subr.mxu0 0.0
  %109 = vmatpush1.msra.mxu0 0.0
  %110 = vmatprep.subr.mxu0 0.0
  %111 = vmatpush1.msra.mxu0 0.0
  %112 = vmatprep.subr.mxu0 0.0
  %113 = vmatpush1.msra.mxu0 0.0
  %114 = vmatprep.subr.mxu0 0.0
  %115 = vmatpush1.msra.mxu0 0.0
  %116 = vmatprep.subr.mxu0 0.0
  %117 = vmatpush1.msra.mxu0 0.0
  %118 = vmatprep.subr.mxu0 0.0
  %119 = vmatpush1.msra.mxu0 0.0
  %120 = vmatprep.subr.mxu0 0.0
  %121 = vmatpush1.msra.mxu0 0.0
  %122 = vmatprep.subr.mxu0 0.0
  %123 = vmatpush1.msra.mxu0 0.0
  %124 = vmatprep.subr.mxu0 0.0
  %125 = vmatpush1.msra.mxu0 0.0
  %126 = vmatprep.subr.mxu0 0.0
  %127 = vmatpush1.msra.mxu0 0.0
  %128 = vmatprep.subr.mxu0 0.0
  %129 = vmatpush1.msra.mxu0 0.0
  %130 = vmatprep.subr.mxu0 0.0
  %131 = vmatpush1.msra.mxu0 0.0
  %132 = vmatprep.subr.mxu0 0.0
  %133 = vmatpush1.msra.mxu0 0.0
  %134 = vmatprep.subr.mxu0 0.0
  %135 = vmatpush1.msra.mxu0 0.0
  %136 = vmatprep.subr.mxu0 0.0
  %137 = vmatpush1.msra.mxu0 0.0
  %138 = vmatprep.mubr.f32.mxu0 0.0
  %139 = vmatmul.mubr.f32.gmra.mrb[0].mxu0 %v68
  %v140 = vpop.f32.mrb[0].mxu0
  %v141 = vadd.f32 0.0, %v140
  %v142 = vpop.f32.mrb[0].mxu0
  %143 = vdwg.mxu0
  %v144 = vadd.f32 %v65, %v141
  %v146 = vsel %vm66, %v19, 0
  %v149 = vsel %vm70, %v36, 0
  %151 = vmatprep.subr.mxu0 0.0
  %152 = vmatpush1.msra.mxu0 %v149
  %153 = vmatprep.subr.mxu0 0.0
  %154 = vmatpush1.msra.mxu0 0.0
  %155 = vmatprep.subr.mxu0 0.0
  %156 = vmatpush1.msra.mxu0 0.0
  %157 = vmatprep.subr.mxu0 0.0
  %158 = vmatpush1.msra.mxu0 0.0
  %159 = vmatprep.subr.mxu0 0.0
  %160 = vmatpush1.msra.mxu0 0.0
  %161 = vmatprep.subr.mxu0 0.0
  %162 = vmatpush1.msra.mxu0 0.0
  %163 = vmatprep.subr.mxu0 0.0
  %164 = vmatpush1.msra.mxu0 0.0
  %165 = vmatprep.subr.mxu0 0.0
  %166 = vmatpush1.msra.mxu0 0.0
  %167 = vmatprep.subr.mxu0 0.0
  %168 = vmatpush1.msra.mxu0 0.0
  %169 = vmatprep.subr.mxu0 0.0
  %170 = vmatpush1.msra.mxu0 0.0
  %171 = vmatprep.subr.mxu0 0.0
  %172 = vmatpush1.msra.mxu0 0.0
  %173 = vmatprep.subr.mxu0 0.0
  %174 = vmatpush1.msra.mxu0 0.0
  %175 = vmatprep.subr.mxu0 0.0
  %176 = vmatpush1.msra.mxu0 0.0
  %177 = vmatprep.subr.mxu0 0.0
  %178 = vmatpush1.msra.mxu0 0.0
  %179 = vmatprep.subr.mxu0 0.0
  %180 = vmatpush1.msra.mxu0 0.0
  %181 = vmatprep.subr.mxu0 0.0
  %182 = vmatpush1.msra.mxu0 0.0
  %183 = vmatprep.subr.mxu0 0.0
  %184 = vmatpush1.msra.mxu0 0.0
  %185 = vmatprep.subr.mxu0 0.0
  %186 = vmatpush1.msra.mxu0 0.0
  %187 = vmatprep.subr.mxu0 0.0
  %188 = vmatpush1.msra.mxu0 0.0
  %189 = vmatprep.subr.mxu0 0.0
  %190 = vmatpush1.msra.mxu0 0.0
  %191 = vmatprep.subr.mxu0 0.0
  %192 = vmatpush1.msra.mxu0 0.0
  %193 = vmatprep.subr.mxu0 0.0
  %194 = vmatpush1.msra.mxu0 0.0
  %195 = vmatprep.subr.mxu0 0.0
  %196 = vmatpush1.msra.mxu0 0.0
  %197 = vmatprep.subr.mxu0 0.0
  %198 = vmatpush1.msra.mxu0 0.0
  %199 = vmatprep.subr.mxu0 0.0
  %200 = vmatpush1.msra.mxu0 0.0
  %201 = vmatprep.subr.mxu0 0.0
  %202 = vmatpush1.msra.mxu0 0.0
  %203 = vmatprep.subr.mxu0 0.0
  %204 = vmatpush1.msra.mxu0 0.0
  %205 = vmatprep.subr.mxu0 0.0
  %206 = vmatpush1.msra.mxu0 0.0
  %207 = vmatprep.subr.mxu0 0.0
  %208 = vmatpush1.msra.mxu0 0.0
  %209 = vmatprep.subr.mxu0 0.0
  %210 = vmatpush1.msra.mxu0 0.0
  %211 = vmatprep.subr.mxu0 0.0
  %212 = vmatpush1.msra.mxu0 0.0
  %213 = vmatprep.subr.mxu0 0.0
  %214 = vmatpush1.msra.mxu0 0.0
  %215 = vmatprep.mubr.f32.mxu0 0.0
  %216 = vmatmul.mubr.f32.gmra.mrb[0].mxu0 %v146
  %v217 = vpop.f32.mrb[0].mxu0
  %v218 = vadd.f32 0.0, %v217
  %v219 = vpop.f32.mrb[0].mxu0
  %220 = vdwg.mxu0
  %v221 = vadd.f32 %v144, %v218
  %v223 = vsel %vm66, %v21, 0
  %v226 = vsel %vm70, %v38, 0
  %228 = vmatprep.subr.mxu0 0.0
  %229 = vmatpush1.msra.mxu0 %v226
  %230 = vmatprep.subr.mxu0 0.0
  %231 = vmatpush1.msra.mxu0 0.0
  %232 = vmatprep.subr.mxu0 0.0
  %233 = vmatpush1.msra.mxu0 0.0
  %234 = vmatprep.subr.mxu0 0.0
  %235 = vmatpush1.msra.mxu0 0.0
  %236 = vmatprep.subr.mxu0 0.0
  %237 = vmatpush1.msra.mxu0 0.0
  %238 = vmatprep.subr.mxu0 0.0
  %239 = vmatpush1.msra.mxu0 0.0
  %240 = vmatprep.subr.mxu0 0.0
  %241 = vmatpush1.msra.mxu0 0.0
  %242 = vmatprep.subr.mxu0 0.0
  %243 = vmatpush1.msra.mxu0 0.0
  %244 = vmatprep.subr.mxu0 0.0
  %245 = vmatpush1.msra.mxu0 0.0
  %246 = vmatprep.subr.mxu0 0.0
  %247 = vmatpush1.msra.mxu0 0.0
  %248 = vmatprep.subr.mxu0 0.0
  %249 = vmatpush1.msra.mxu0 0.0
  %250 = vmatprep.subr.mxu0 0.0
  %251 = vmatpush1.msra.mxu0 0.0
  %252 = vmatprep.subr.mxu0 0.0
  %253 = vmatpush1.msra.mxu0 0.0
  %254 = vmatprep.subr.mxu0 0.0
  %255 = vmatpush1.msra.mxu0 0.0
  %256 = vmatprep.subr.mxu0 0.0
  %257 = vmatpush1.msra.mxu0 0.0
  %258 = vmatprep.subr.mxu0 0.0
  %259 = vmatpush1.msra.mxu0 0.0
  %260 = vmatprep.subr.mxu0 0.0
  %261 = vmatpush1.msra.mxu0 0.0
  %262 = vmatprep.subr.mxu0 0.0
  %263 = vmatpush1.msra.mxu0 0.0
  %264 = vmatprep.subr.mxu0 0.0
  %265 = vmatpush1.msra.mxu0 0.0
  %266 = vmatprep.subr.mxu0 0.0
  %267 = vmatpush1.msra.mxu0 0.0
  %268 = vmatprep.subr.mxu0 0.0
  %269 = vmatpush1.msra.mxu0 0.0
  %270 = vmatprep.subr.mxu0 0.0
  %271 = vmatpush1.msra.mxu0 0.0
  %272 = vmatprep.subr.mxu0 0.0
  %273 = vmatpush1.msra.mxu0 0.0
  %274 = vmatprep.subr.mxu0 0.0
  %275 = vmatpush1.msra.mxu0 0.0
  %276 = vmatprep.subr.mxu0 0.0
  %277 = vmatpush1.msra.mxu0 0.0
  %278 = vmatprep.subr.mxu0 0.0
  %279 = vmatpush1.msra.mxu0 0.0
  %280 = vmatprep.subr.mxu0 0.0
  %281 = vmatpush1.msra.mxu0 0.0
  %282 = vmatprep.subr.mxu0 0.0
  %283 = vmatpush1.msra.mxu0 0.0
  %284 = vmatprep.subr.mxu0 0.0
  %285 = vmatpush1.msra.mxu0 0.0
  %286 = vmatprep.subr.mxu0 0.0
  %287 = vmatpush1.msra.mxu0 0.0
  %288 = vmatprep.subr.mxu0 0.0
  %289 = vmatpush1.msra.mxu0 0.0
  %290 = vmatprep.subr.mxu0 0.0
  %291 = vmatpush1.msra.mxu0 0.0
  %292 = vmatprep.mubr.f32.mxu0 0.0
  %293 = vmatmul.mubr.f32.gmra.mrb[0].mxu0 %v223
  %v294 = vpop.f32.mrb[0].mxu0
  %v295 = vadd.f32 0.0, %v294
  %v296 = vpop.f32.mrb[0].mxu0
  %297 = vdwg.mxu0
  %v298 = vadd.f32 %v221, %v295
  %v300 = vsel %vm66, %v23, 0
  %v303 = vsel %vm70, %v42, 0
  %305 = vmatprep.subr.mxu0 0.0
  %306 = vmatpush1.msra.mxu0 %v303
  %307 = vmatprep.subr.mxu0 0.0
  %308 = vmatpush1.msra.mxu0 0.0
  %309 = vmatprep.subr.mxu0 0.0
  %310 = vmatpush1.msra.mxu0 0.0
  %311 = vmatprep.subr.mxu0 0.0
  %312 = vmatpush1.msra.mxu0 0.0
  %313 = vmatprep.subr.mxu0 0.0
  %314 = vmatpush1.msra.mxu0 0.0
  %315 = vmatprep.subr.mxu0 0.0
  %316 = vmatpush1.msra.mxu0 0.0
  %317 = vmatprep.subr.mxu0 0.0
  %318 = vmatpush1.msra.mxu0 0.0
  %319 = vmatprep.subr.mxu0 0.0
  %320 = vmatpush1.msra.mxu0 0.0
  %321 = vmatprep.subr.mxu0 0.0
  %322 = vmatpush1.msra.mxu0 0.0
  %323 = vmatprep.subr.mxu0 0.0
  %324 = vmatpush1.msra.mxu0 0.0
  %325 = vmatprep.subr.mxu0 0.0
  %326 = vmatpush1.msra.mxu0 0.0
  %327 = vmatprep.subr.mxu0 0.0
  %328 = vmatpush1.msra.mxu0 0.0
  %329 = vmatprep.subr.mxu0 0.0
  %330 = vmatpush1.msra.mxu0 0.0
  %331 = vmatprep.subr.mxu0 0.0
  %332 = vmatpush1.msra.mxu0 0.0
  %333 = vmatprep.subr.mxu0 0.0
  %334 = vmatpush1.msra.mxu0 0.0
  %335 = vmatprep.subr.mxu0 0.0
  %336 = vmatpush1.msra.mxu0 0.0
  %337 = vmatprep.subr.mxu0 0.0
  %338 = vmatpush1.msra.mxu0 0.0
  %339 = vmatprep.subr.mxu0 0.0
  %340 = vmatpush1.msra.mxu0 0.0
  %341 = vmatprep.subr.mxu0 0.0
  %342 = vmatpush1.msra.mxu0 0.0
  %343 = vmatprep.subr.mxu0 0.0
  %344 = vmatpush1.msra.mxu0 0.0
  %345 = vmatprep.subr.mxu0 0.0
  %346 = vmatpush1.msra.mxu0 0.0
  %347 = vmatprep.subr.mxu0 0.0
  %348 = vmatpush1.msra.mxu0 0.0
  %349 = vmatprep.subr.mxu0 0.0
  %350 = vmatpush1.msra.mxu0 0.0
  %351 = vmatprep.subr.mxu0 0.0
  %352 = vmatpush1.msra.mxu0 0.0
  %353 = vmatprep.subr.mxu0 0.0
  %354 = vmatpush1.msra.mxu0 0.0
  %355 = vmatprep.subr.mxu0 0.0
  %356 = vmatpush1.msra.mxu0 0.0
  %357 = vmatprep.subr.mxu0 0.0
  %358 = vmatpush1.msra.mxu0 0.0
  %359 = vmatprep.subr.mxu0 0.0
  %360 = vmatpush1.msra.mxu0 0.0
  %361 = vmatprep.subr.mxu0 0.0
  %362 = vmatpush1.msra.mxu0 0.0
  %363 = vmatprep.subr.mxu0 0.0
  %364 = vmatpush1.msra.mxu0 0.0
  %365 = vmatprep.subr.mxu0 0.0
  %366 = vmatpush1.msra.mxu0 0.0
  %367 = vmatprep.subr.mxu0 0.0
  %368 = vmatpush1.msra.mxu0 0.0
  %369 = vmatprep.mubr.f32.mxu0 0.0
  %370 = vmatmul.mubr.f32.gmra.mrb[0].mxu0 %v300
  %v371 = vpop.f32.mrb[0].mxu0
  %v372 = vadd.f32 0.0, %v371
  %v373 = vpop.f32.mrb[0].mxu0
  %374 = vdwg.mxu0
  %v375 = vadd.f32 %v298, %v372
  %v377 = vsel %vm66, %v25, 0
  %v380 = vsel %vm70, %v44, 0
  %382 = vmatprep.subr.mxu0 0.0
  %383 = vmatpush1.msra.mxu0 %v380
  %384 = vmatprep.subr.mxu0 0.0
  %385 = vmatpush1.msra.mxu0 0.0
  %386 = vmatprep.subr.mxu0 0.0
  %387 = vmatpush1.msra.mxu0 0.0
  %388 = vmatprep.subr.mxu0 0.0
  %389 = vmatpush1.msra.mxu0 0.0
  %390 = vmatprep.subr.mxu0 0.0
  %391 = vmatpush1.msra.mxu0 0.0
  %392 = vmatprep.subr.mxu0 0.0
  %393 = vmatpush1.msra.mxu0 0.0
  %394 = vmatprep.subr.mxu0 0.0
  %395 = vmatpush1.msra.mxu0 0.0
  %396 = vmatprep.subr.mxu0 0.0
  %397 = vmatpush1.msra.mxu0 0.0
  %398 = vmatprep.subr.mxu0 0.0
  %399 = vmatpush1.msra.mxu0 0.0
  %400 = vmatprep.subr.mxu0 0.0
  %401 = vmatpush1.msra.mxu0 0.0
  %402 = vmatprep.subr.mxu0 0.0
  %403 = vmatpush1.msra.mxu0 0.0
  %404 = vmatprep.subr.mxu0 0.0
  %405 = vmatpush1.msra.mxu0 0.0
  %406 = vmatprep.subr.mxu0 0.0
  %407 = vmatpush1.msra.mxu0 0.0
  %408 = vmatprep.subr.mxu0 0.0
  %409 = vmatpush1.msra.mxu0 0.0
  %410 = vmatprep.subr.mxu0 0.0
  %411 = vmatpush1.msra.mxu0 0.0
  %412 = vmatprep.subr.mxu0 0.0
  %413 = vmatpush1.msra.mxu0 0.0
  %414 = vmatprep.subr.mxu0 0.0
  %415 = vmatpush1.msra.mxu0 0.0
  %416 = vmatprep.subr.mxu0 0.0
  %417 = vmatpush1.msra.mxu0 0.0
  %418 = vmatprep.subr.mxu0 0.0
  %419 = vmatpush1.msra.mxu0 0.0
  %420 = vmatprep.subr.mxu0 0.0
  %421 = vmatpush1.msra.mxu0 0.0
  %422 = vmatprep.subr.mxu0 0.0
  %423 = vmatpush1.msra.mxu0 0.0
  %424 = vmatprep.subr.mxu0 0.0
  %425 = vmatpush1.msra.mxu0 0.0
  %426 = vmatprep.subr.mxu0 0.0
  %427 = vmatpush1.msra.mxu0 0.0
  %428 = vmatprep.subr.mxu0 0.0
  %429 = vmatpush1.msra.mxu0 0.0
  %430 = vmatprep.subr.mxu0 0.0
  %431 = vmatpush1.msra.mxu0 0.0
  %432 = vmatprep.subr.mxu0 0.0
  %433 = vmatpush1.msra.mxu0 0.0
  %434 = vmatprep.subr.mxu0 0.0
  %435 = vmatpush1.msra.mxu0 0.0
  %436 = vmatprep.subr.mxu0 0.0
  %437 = vmatpush1.msra.mxu0 0.0
  %438 = vmatprep.subr.mxu0 0.0
  %439 = vmatpush1.msra.mxu0 0.0
  %440 = vmatprep.subr.mxu0 0.0
  %441 = vmatpush1.msra.mxu0 0.0
  %442 = vmatprep.subr.mxu0 0.0
  %443 = vmatpush1.msra.mxu0 0.0
  %444 = vmatprep.subr.mxu0 0.0
  %445 = vmatpush1.msra.mxu0 0.0
  %446 = vmatprep.mubr.f32.mxu0 0.0
  %447 = vmatmul.mubr.f32.gmra.mrb[0].mxu0 %v377
  %v448 = vpop.f32.mrb[0].mxu0
  %v449 = vadd.f32 0.0, %v448
  %v450 = vpop.f32.mrb[0].mxu0
  %451 = vdwg.mxu0
  %v452 = vadd.f32 %v375, %v449
  %v454 = vsel %vm66, %v27, 0
  %v457 = vsel %vm70, %v46, 0
  %459 = vmatprep.subr.mxu0 0.0
  %460 = vmatpush1.msra.mxu0 %v457
  %461 = vmatprep.subr.mxu0 0.0
  %462 = vmatpush1.msra.mxu0 0.0
  %463 = vmatprep.subr.mxu0 0.0
  %464 = vmatpush1.msra.mxu0 0.0
  %465 = vmatprep.subr.mxu0 0.0
  %466 = vmatpush1.msra.mxu0 0.0
  %467 = vmatprep.subr.mxu0 0.0
  %468 = vmatpush1.msra.mxu0 0.0
  %469 = vmatprep.subr.mxu0 0.0
  %470 = vmatpush1.msra.mxu0 0.0
  %471 = vmatprep.subr.mxu0 0.0
  %472 = vmatpush1.msra.mxu0 0.0
  %473 = vmatprep.subr.mxu0 0.0
  %474 = vmatpush1.msra.mxu0 0.0
  %475 = vmatprep.subr.mxu0 0.0
  %476 = vmatpush1.msra.mxu0 0.0
  %477 = vmatprep.subr.mxu0 0.0
  %478 = vmatpush1.msra.mxu0 0.0
  %479 = vmatprep.subr.mxu0 0.0
  %480 = vmatpush1.msra.mxu0 0.0
  %481 = vmatprep.subr.mxu0 0.0
  %482 = vmatpush1.msra.mxu0 0.0
  %483 = vmatprep.subr.mxu0 0.0
  %484 = vmatpush1.msra.mxu0 0.0
  %485 = vmatprep.subr.mxu0 0.0
  %486 = vmatpush1.msra.mxu0 0.0
  %487 = vmatprep.subr.mxu0 0.0
  %488 = vmatpush1.msra.mxu0 0.0
  %489 = vmatprep.subr.mxu0 0.0
  %490 = vmatpush1.msra.mxu0 0.0
  %491 = vmatprep.subr.mxu0 0.0
  %492 = vmatpush1.msra.mxu0 0.0
  %493 = vmatprep.subr.mxu0 0.0
  %494 = vmatpush1.msra.mxu0 0.0
  %495 = vmatprep.subr.mxu0 0.0
  %496 = vmatpush1.msra.mxu0 0.0
  %497 = vmatprep.subr.mxu0 0.0
  %498 = vmatpush1.msra.mxu0 0.0
  %499 = vmatprep.subr.mxu0 0.0
  %500 = vmatpush1.msra.mxu0 0.0
  %501 = vmatprep.subr.mxu0 0.0
  %502 = vmatpush1.msra.mxu0 0.0
  %503 = vmatprep.subr.mxu0 0.0
  %504 = vmatpush1.msra.mxu0 0.0
  %505 = vmatprep.subr.mxu0 0.0
  %506 = vmatpush1.msra.mxu0 0.0
  %507 = vmatprep.subr.mxu0 0.0
  %508 = vmatpush1.msra.mxu0 0.0
  %509 = vmatprep.subr.mxu0 0.0
  %510 = vmatpush1.msra.mxu0 0.0
  %511 = vmatprep.subr.mxu0 0.0
  %512 = vmatpush1.msra.mxu0 0.0
  %513 = vmatprep.subr.mxu0 0.0
  %514 = vmatpush1.msra.mxu0 0.0
  %515 = vmatprep.subr.mxu0 0.0
  %516 = vmatpush1.msra.mxu0 0.0
  %517 = vmatprep.subr.mxu0 0.0
  %518 = vmatpush1.msra.mxu0 0.0
  %519 = vmatprep.subr.mxu0 0.0
  %520 = vmatpush1.msra.mxu0 0.0
  %521 = vmatprep.subr.mxu0 0.0
  %522 = vmatpush1.msra.mxu0 0.0
  %523 = vmatprep.mubr.f32.mxu0 0.0
  %524 = vmatmul.mubr.f32.gmra.mrb[0].mxu0 %v454
  %v525 = vpop.f32.mrb[0].mxu0
  %v526 = vadd.f32 0.0, %v525
  %v527 = vpop.f32.mrb[0].mxu0
  %528 = vdwg.mxu0
  %v529 = vadd.f32 %v452, %v526
  %v531 = vsel %vm66, %v29, 0
  %v534 = vsel %vm70, %v50, 0
  %536 = vmatprep.subr.mxu0 0.0
  %537 = vmatpush1.msra.mxu0 %v534
  %538 = vmatprep.subr.mxu0 0.0
  %539 = vmatpush1.msra.mxu0 0.0
  %540 = vmatprep.subr.mxu0 0.0
  %541 = vmatpush1.msra.mxu0 0.0
  %542 = vmatprep.subr.mxu0 0.0
  %543 = vmatpush1.msra.mxu0 0.0
  %544 = vmatprep.subr.mxu0 0.0
  %545 = vmatpush1.msra.mxu0 0.0
  %546 = vmatprep.subr.mxu0 0.0
  %547 = vmatpush1.msra.mxu0 0.0
  %548 = vmatprep.subr.mxu0 0.0
  %549 = vmatpush1.msra.mxu0 0.0
  %550 = vmatprep.subr.mxu0 0.0
  %551 = vmatpush1.msra.mxu0 0.0
  %552 = vmatprep.subr.mxu0 0.0
  %553 = vmatpush1.msra.mxu0 0.0
  %554 = vmatprep.subr.mxu0 0.0
  %555 = vmatpush1.msra.mxu0 0.0
  %556 = vmatprep.subr.mxu0 0.0
  %557 = vmatpush1.msra.mxu0 0.0
  %558 = vmatprep.subr.mxu0 0.0
  %559 = vmatpush1.msra.mxu0 0.0
  %560 = vmatprep.subr.mxu0 0.0
  %561 = vmatpush1.msra.mxu0 0.0
  %562 = vmatprep.subr.mxu0 0.0
  %563 = vmatpush1.msra.mxu0 0.0
  %564 = vmatprep.subr.mxu0 0.0
  %565 = vmatpush1.msra.mxu0 0.0
  %566 = vmatprep.subr.mxu0 0.0
  %567 = vmatpush1.msra.mxu0 0.0
  %568 = vmatprep.subr.mxu0 0.0
  %569 = vmatpush1.msra.mxu0 0.0
  %570 = vmatprep.subr.mxu0 0.0
  %571 = vmatpush1.msra.mxu0 0.0
  %572 = vmatprep.subr.mxu0 0.0
  %573 = vmatpush1.msra.mxu0 0.0
  %574 = vmatprep.subr.mxu0 0.0
  %575 = vmatpush1.msra.mxu0 0.0
  %576 = vmatprep.subr.mxu0 0.0
  %577 = vmatpush1.msra.mxu0 0.0
  %578 = vmatprep.subr.mxu0 0.0
  %579 = vmatpush1.msra.mxu0 0.0
  %580 = vmatprep.subr.mxu0 0.0
  %581 = vmatpush1.msra.mxu0 0.0
  %582 = vmatprep.subr.mxu0 0.0
  %583 = vmatpush1.msra.mxu0 0.0
  %584 = vmatprep.subr.mxu0 0.0
  %585 = vmatpush1.msra.mxu0 0.0
  %586 = vmatprep.subr.mxu0 0.0
  %587 = vmatpush1.msra.mxu0 0.0
  %588 = vmatprep.subr.mxu0 0.0
  %589 = vmatpush1.msra.mxu0 0.0
  %590 = vmatprep.subr.mxu0 0.0
  %591 = vmatpush1.msra.mxu0 0.0
  %592 = vmatprep.subr.mxu0 0.0
  %593 = vmatpush1.msra.mxu0 0.0
  %594 = vmatprep.subr.mxu0 0.0
  %595 = vmatpush1.msra.mxu0 0.0
  %596 = vmatprep.subr.mxu0 0.0
  %597 = vmatpush1.msra.mxu0 0.0
  %598 = vmatprep.subr.mxu0 0.0
  %599 = vmatpush1.msra.mxu0 0.0
  %600 = vmatprep.mubr.f32.mxu0 0.0
  %601 = vmatmul.mubr.f32.gmra.mrb[0].mxu0 %v531
  %v602 = vpop.f32.mrb[0].mxu0
  %v603 = vadd.f32 0.0, %v602
  %v604 = vpop.f32.mrb[0].mxu0
  %605 = vdwg.mxu0
  %v606 = vadd.f32 %v529, %v603
  %v608 = vsel %vm66, %v31, 0
  %v611 = vsel %vm70, %v52, 0
  %613 = vmatprep.subr.mxu0 0.0
  %614 = vmatpush1.msra.mxu0 %v611
  %615 = vmatprep.subr.mxu0 0.0
  %616 = vmatpush1.msra.mxu0 0.0
  %617 = vmatprep.subr.mxu0 0.0
  %618 = vmatpush1.msra.mxu0 0.0
  %619 = vmatprep.subr.mxu0 0.0
  %620 = vmatpush1.msra.mxu0 0.0
  %621 = vmatprep.subr.mxu0 0.0
  %622 = vmatpush1.msra.mxu0 0.0
  %623 = vmatprep.subr.mxu0 0.0
  %624 = vmatpush1.msra.mxu0 0.0
  %625 = vmatprep.subr.mxu0 0.0
  %626 = vmatpush1.msra.mxu0 0.0
  %627 = vmatprep.subr.mxu0 0.0
  %628 = vmatpush1.msra.mxu0 0.0
  %629 = vmatprep.subr.mxu0 0.0
  %630 = vmatpush1.msra.mxu0 0.0
  %631 = vmatprep.subr.mxu0 0.0
  %632 = vmatpush1.msra.mxu0 0.0
  %633 = vmatprep.subr.mxu0 0.0
  %634 = vmatpush1.msra.mxu0 0.0
  %635 = vmatprep.subr.mxu0 0.0
  %636 = vmatpush1.msra.mxu0 0.0
  %637 = vmatprep.subr.mxu0 0.0
  %638 = vmatpush1.msra.mxu0 0.0
  %639 = vmatprep.subr.mxu0 0.0
  %640 = vmatpush1.msra.mxu0 0.0
  %641 = vmatprep.subr.mxu0 0.0
  %642 = vmatpush1.msra.mxu0 0.0
  %643 = vmatprep.subr.mxu0 0.0
  %644 = vmatpush1.msra.mxu0 0.0
  %645 = vmatprep.subr.mxu0 0.0
  %646 = vmatpush1.msra.mxu0 0.0
  %647 = vmatprep.subr.mxu0 0.0
  %648 = vmatpush1.msra.mxu0 0.0
  %649 = vmatprep.subr.mxu0 0.0
  %650 = vmatpush1.msra.mxu0 0.0
  %651 = vmatprep.subr.mxu0 0.0
  %652 = vmatpush1.msra.mxu0 0.0
  %653 = vmatprep.subr.mxu0 0.0
  %654 = vmatpush1.msra.mxu0 0.0
  %655 = vmatprep.subr.mxu0 0.0
  %656 = vmatpush1.msra.mxu0 0.0
  %657 = vmatprep.subr.mxu0 0.0
  %658 = vmatpush1.msra.mxu0 0.0
  %659 = vmatprep.subr.mxu0 0.0
  %660 = vmatpush1.msra.mxu0 0.0
  %661 = vmatprep.subr.mxu0 0.0
  %662 = vmatpush1.msra.mxu0 0.0
  %663 = vmatprep.subr.mxu0 0.0
  %664 = vmatpush1.msra.mxu0 0.0
  %665 = vmatprep.subr.mxu0 0.0
  %666 = vmatpush1.msra.mxu0 0.0
  %667 = vmatprep.subr.mxu0 0.0
  %668 = vmatpush1.msra.mxu0 0.0
  %669 = vmatprep.subr.mxu0 0.0
  %670 = vmatpush1.msra.mxu0 0.0
  %671 = vmatprep.subr.mxu0 0.0
  %672 = vmatpush1.msra.mxu0 0.0
  %673 = vmatprep.subr.mxu0 0.0
  %674 = vmatpush1.msra.mxu0 0.0
  %675 = vmatprep.subr.mxu0 0.0
  %676 = vmatpush1.msra.mxu0 0.0
  %677 = vmatprep.mubr.f32.mxu0 0.0
  %678 = vmatmul.mubr.f32.gmra.mrb[0].mxu0 %v608
  %v679 = vpop.f32.mrb[0].mxu0
  %v680 = vadd.f32 0.0, %v679
  %v681 = vpop.f32.mrb[0].mxu0
  %682 = vdwg.mxu0
  %v683 = vadd.f32 %v606, %v680
  %v685 = vsel %vm66, %v33, 0
  %v688 = vsel %vm70, %v54, 0
  %690 = vmatprep.subr.mxu0 0.0
  %691 = vmatpush1.msra.mxu0 %v688
  %692 = vmatprep.subr.mxu0 0.0
  %693 = vmatpush1.msra.mxu0 0.0
  %694 = vmatprep.subr.mxu0 0.0
  %695 = vmatpush1.msra.mxu0 0.0
  %696 = vmatprep.subr.mxu0 0.0
  %697 = vmatpush1.msra.mxu0 0.0
  %698 = vmatprep.subr.mxu0 0.0
  %699 = vmatpush1.msra.mxu0 0.0
  %700 = vmatprep.subr.mxu0 0.0
  %701 = vmatpush1.msra.mxu0 0.0
  %702 = vmatprep.subr.mxu0 0.0
  %703 = vmatpush1.msra.mxu0 0.0
  %704 = vmatprep.subr.mxu0 0.0
  %705 = vmatpush1.msra.mxu0 0.0
  %706 = vmatprep.subr.mxu0 0.0
  %707 = vmatpush1.msra.mxu0 0.0
  %708 = vmatprep.subr.mxu0 0.0
  %709 = vmatpush1.msra.mxu0 0.0
  %710 = vmatprep.subr.mxu0 0.0
  %711 = vmatpush1.msra.mxu0 0.0
  %712 = vmatprep.subr.mxu0 0.0
  %713 = vmatpush1.msra.mxu0 0.0
  %714 = vmatprep.subr.mxu0 0.0
  %715 = vmatpush1.msra.mxu0 0.0
  %716 = vmatprep.subr.mxu0 0.0
  %717 = vmatpush1.msra.mxu0 0.0
  %718 = vmatprep.subr.mxu0 0.0
  %719 = vmatpush1.msra.mxu0 0.0
  %720 = vmatprep.subr.mxu0 0.0
  %721 = vmatpush1.msra.mxu0 0.0
  %722 = vmatprep.subr.mxu0 0.0
  %723 = vmatpush1.msra.mxu0 0.0
  %724 = vmatprep.subr.mxu0 0.0
  %725 = vmatpush1.msra.mxu0 0.0
  %726 = vmatprep.subr.mxu0 0.0
  %727 = vmatpush1.msra.mxu0 0.0
  %728 = vmatprep.subr.mxu0 0.0
  %729 = vmatpush1.msra.mxu0 0.0
  %730 = vmatprep.subr.mxu0 0.0
  %731 = vmatpush1.msra.mxu0 0.0
  %732 = vmatprep.subr.mxu0 0.0
  %733 = vmatpush1.msra.mxu0 0.0
  %734 = vmatprep.subr.mxu0 0.0
  %735 = vmatpush1.msra.mxu0 0.0
  %736 = vmatprep.subr.mxu0 0.0
  %737 = vmatpush1.msra.mxu0 0.0
  %738 = vmatprep.subr.mxu0 0.0
  %739 = vmatpush1.msra.mxu0 0.0
  %740 = vmatprep.subr.mxu0 0.0
  %741 = vmatpush1.msra.mxu0 0.0
  %742 = vmatprep.subr.mxu0 0.0
  %743 = vmatpush1.msra.mxu0 0.0
  %744 = vmatprep.subr.mxu0 0.0
  %745 = vmatpush1.msra.mxu0 0.0
  %746 = vmatprep.subr.mxu0 0.0
  %747 = vmatpush1.msra.mxu0 0.0
  %748 = vmatprep.subr.mxu0 0.0
  %749 = vmatpush1.msra.mxu0 0.0
  %750 = vmatprep.subr.mxu0 0.0
  %751 = vmatpush1.msra.mxu0 0.0
  %752 = vmatprep.subr.mxu0 0.0
  %753 = vmatpush1.msra.mxu0 0.0
  %754 = vmatprep.mubr.f32.mxu0 0.0
  %755 = vmatmul.mubr.f32.gmra.mrb[0].mxu0 %v685
  %v756 = vpop.f32.mrb[0].mxu0
  %v757 = vadd.f32 0.0, %v756
  %v758 = vpop.f32.mrb[0].mxu0
  %759 = vdwg.mxu0
  %v760 = vadd.f32 %v683, %v757
  %s761 = scalar_lea.vmem %s3, 8
  %v762 = vld [vmem:[%s761] sm:$0xff]
  %763 = vmatprep.subr.mxu0 0.0
  %764 = vmatpush1.msra.mxu0 %v149
  %765 = vmatprep.subr.mxu0 0.0
  %766 = vmatpush1.msra.mxu0 0.0
  %767 = vmatprep.subr.mxu0 0.0
  %768 = vmatpush1.msra.mxu0 0.0
  %769 = vmatprep.subr.mxu0 0.0
  %770 = vmatpush1.msra.mxu0 0.0
  %771 = vmatprep.subr.mxu0 0.0
  %772 = vmatpush1.msra.mxu0 0.0
  %773 = vmatprep.subr.mxu0 0.0
  %774 = vmatpush1.msra.mxu0 0.0
  %775 = vmatprep.subr.mxu0 0.0
  %776 = vmatpush1.msra.mxu0 0.0
  %777 = vmatprep.subr.mxu0 0.0
  %778 = vmatpush1.msra.mxu0 0.0
  %779 = vmatprep.subr.mxu0 0.0
  %780 = vmatpush1.msra.mxu0 0.0
  %781 = vmatprep.subr.mxu0 0.0
  %782 = vmatpush1.msra.mxu0 0.0
  %783 = vmatprep.subr.mxu0 0.0
  %784 = vmatpush1.msra.mxu0 0.0
  %785 = vmatprep.subr.mxu0 0.0
  %786 = vmatpush1.msra.mxu0 0.0
  %787 = vmatprep.subr.mxu0 0.0
  %788 = vmatpush1.msra.mxu0 0.0
  %789 = vmatprep.subr.mxu0 0.0
  %790 = vmatpush1.msra.mxu0 0.0
  %791 = vmatprep.subr.mxu0 0.0
  %792 = vmatpush1.msra.mxu0 0.0
  %793 = vmatprep.subr.mxu0 0.0
  %794 = vmatpush1.msra.mxu0 0.0
  %795 = vmatprep.subr.mxu0 0.0
  %796 = vmatpush1.msra.mxu0 0.0
  %797 = vmatprep.subr.mxu0 0.0
  %798 = vmatpush1.msra.mxu0 0.0
  %799 = vmatprep.subr.mxu0 0.0
  %800 = vmatpush1.msra.mxu0 0.0
  %801 = vmatprep.subr.mxu0 0.0
  %802 = vmatpush1.msra.mxu0 0.0
  %803 = vmatprep.subr.mxu0 0.0
  %804 = vmatpush1.msra.mxu0 0.0
  %805 = vmatprep.subr.mxu0 0.0
  %806 = vmatpush1.msra.mxu0 0.0
  %807 = vmatprep.subr.mxu0 0.0
  %808 = vmatpush1.msra.mxu0 0.0
  %809 = vmatprep.subr.mxu0 0.0
  %810 = vmatpush1.msra.mxu0 0.0
  %811 = vmatprep.subr.mxu0 0.0
  %812 = vmatpush1.msra.mxu0 0.0
  %813 = vmatprep.subr.mxu0 0.0
  %814 = vmatpush1.msra.mxu0 0.0
  %815 = vmatprep.subr.mxu0 0.0
  %816 = vmatpush1.msra.mxu0 0.0
  %817 = vmatprep.subr.mxu0 0.0
  %818 = vmatpush1.msra.mxu0 0.0
  %819 = vmatprep.subr.mxu0 0.0
  %820 = vmatpush1.msra.mxu0 0.0
  %821 = vmatprep.subr.mxu0 0.0
  %822 = vmatpush1.msra.mxu0 0.0
  %823 = vmatprep.subr.mxu0 0.0
  %824 = vmatpush1.msra.mxu0 0.0
  %825 = vmatprep.subr.mxu0 0.0
  %826 = vmatpush1.msra.mxu0 0.0
  %827 = vmatprep.mubr.f32.mxu0 0.0
  %828 = vmatmul.mubr.f32.gmra.mrb[0].mxu0 %v68
  %v829 = vpop.f32.mrb[0].mxu0
  %v830 = vadd.f32 0.0, %v829
  %v831 = vpop.f32.mrb[0].mxu0
  %832 = vdwg.mxu0
  %v833 = vadd.f32 %v762, %v830
  %834 = vmatprep.subr.mxu0 0.0
  %835 = vmatpush1.msra.mxu0 %v226
  %836 = vmatprep.subr.mxu0 0.0
  %837 = vmatpush1.msra.mxu0 0.0
  %838 = vmatprep.subr.mxu0 0.0
  %839 = vmatpush1.msra.mxu0 0.0
  %840 = vmatprep.subr.mxu0 0.0
  %841 = vmatpush1.msra.mxu0 0.0
  %842 = vmatprep.subr.mxu0 0.0
  %843 = vmatpush1.msra.mxu0 0.0
  %844 = vmatprep.subr.mxu0 0.0
  %845 = vmatpush1.msra.mxu0 0.0
  %846 = vmatprep.subr.mxu0 0.0
  %847 = vmatpush1.msra.mxu0 0.0
  %848 = vmatprep.subr.mxu0 0.0
  %849 = vmatpush1.msra.mxu0 0.0
  %850 = vmatprep.subr.mxu0 0.0
  %851 = vmatpush1.msra.mxu0 0.0
  %852 = vmatprep.subr.mxu0 0.0
  %853 = vmatpush1.msra.mxu0 0.0
  %854 = vmatprep.subr.mxu0 0.0
  %855 = vmatpush1.msra.mxu0 0.0
  %856 = vmatprep.subr.mxu0 0.0
  %857 = vmatpush1.msra.mxu0 0.0
  %858 = vmatprep.subr.mxu0 0.0
  %859 = vmatpush1.msra.mxu0 0.0
  %860 = vmatprep.subr.mxu0 0.0
  %861 = vmatpush1.msra.mxu0 0.0
  %862 = vmatprep.subr.mxu0 0.0
  %863 = vmatpush1.msra.mxu0 0.0
  %864 = vmatprep.subr.mxu0 0.0
  %865 = vmatpush1.msra.mxu0 0.0
  %866 = vmatprep.subr.mxu0 0.0
  %867 = vmatpush1.msra.mxu0 0.0
  %868 = vmatprep.subr.mxu0 0.0
  %869 = vmatpush1.msra.mxu0 0.0
  %870 = vmatprep.subr.mxu0 0.0
  %871 = vmatpush1.msra.mxu0 0.0
  %872 = vmatprep.subr.mxu0 0.0
  %873 = vmatpush1.msra.mxu0 0.0
  %874 = vmatprep.subr.mxu0 0.0
  %875 = vmatpush1.msra.mxu0 0.0
  %876 = vmatprep.subr.mxu0 0.0
  %877 = vmatpush1.msra.mxu0 0.0
  %878 = vmatprep.subr.mxu0 0.0
  %879 = vmatpush1.msra.mxu0 0.0
  %880 = vmatprep.subr.mxu0 0.0
  %881 = vmatpush1.msra.mxu0 0.0
  %882 = vmatprep.subr.mxu0 0.0
  %883 = vmatpush1.msra.mxu0 0.0
  %884 = vmatprep.subr.mxu0 0.0
  %885 = vmatpush1.msra.mxu0 0.0
  %886 = vmatprep.subr.mxu0 0.0
  %887 = vmatpush1.msra.mxu0 0.0
  %888 = vmatprep.subr.mxu0 0.0
  %889 = vmatpush1.msra.mxu0 0.0
  %890 = vmatprep.subr.mxu0 0.0
  %891 = vmatpush1.msra.mxu0 0.0
  %892 = vmatprep.subr.mxu0 0.0
  %893 = vmatpush1.msra.mxu0 0.0
  %894 = vmatprep.subr.mxu0 0.0
  %895 = vmatpush1.msra.mxu0 0.0
  %896 = vmatprep.subr.mxu0 0.0
  %897 = vmatpush1.msra.mxu0 0.0
  %898 = vmatprep.mubr.f32.mxu0 0.0
  %899 = vmatmul.mubr.f32.gmra.mrb[0].mxu0 %v146
  %v900 = vpop.f32.mrb[0].mxu0
  %v901 = vadd.f32 0.0, %v900
  %v902 = vpop.f32.mrb[0].mxu0
  %903 = vdwg.mxu0
  %v904 = vadd.f32 %v833, %v901
  %v906 = vsel %vm70, %v40, 0
  %908 = vmatprep.subr.mxu0 0.0
  %909 = vmatpush1.msra.mxu0 %v906
  %910 = vmatprep.subr.mxu0 0.0
  %911 = vmatpush1.msra.mxu0 0.0
  %912 = vmatprep.subr.mxu0 0.0
  %913 = vmatpush1.msra.mxu0 0.0
  %914 = vmatprep.subr.mxu0 0.0
  %915 = vmatpush1.msra.mxu0 0.0
  %916 = vmatprep.subr.mxu0 0.0
  %917 = vmatpush1.msra.mxu0 0.0
  %918 = vmatprep.subr.mxu0 0.0
  %919 = vmatpush1.msra.mxu0 0.0
  %920 = vmatprep.subr.mxu0 0.0
  %921 = vmatpush1.msra.mxu0 0.0
  %922 = vmatprep.subr.mxu0 0.0
  %923 = vmatpush1.msra.mxu0 0.0
  %924 = vmatprep.subr.mxu0 0.0
  %925 = vmatpush1.msra.mxu0 0.0
  %926 = vmatprep.subr.mxu0 0.0
  %927 = vmatpush1.msra.mxu0 0.0
  %928 = vmatprep.subr.mxu0 0.0
  %929 = vmatpush1.msra.mxu0 0.0
  %930 = vmatprep.subr.mxu0 0.0
  %931 = vmatpush1.msra.mxu0 0.0
  %932 = vmatprep.subr.mxu0 0.0
  %933 = vmatpush1.msra.mxu0 0.0
  %934 = vmatprep.subr.mxu0 0.0
  %935 = vmatpush1.msra.mxu0 0.0
  %936 = vmatprep.subr.mxu0 0.0
  %937 = vmatpush1.msra.mxu0 0.0
  %938 = vmatprep.subr.mxu0 0.0
  %939 = vmatpush1.msra.mxu0 0.0
  %940 = vmatprep.subr.mxu0 0.0
  %941 = vmatpush1.msra.mxu0 0.0
  %942 = vmatprep.subr.mxu0 0.0
  %943 = vmatpush1.msra.mxu0 0.0
  %944 = vmatprep.subr.mxu0 0.0
  %945 = vmatpush1.msra.mxu0 0.0
  %946 = vmatprep.subr.mxu0 0.0
  %947 = vmatpush1.msra.mxu0 0.0
  %948 = vmatprep.subr.mxu0 0.0
  %949 = vmatpush1.msra.mxu0 0.0
  %950 = vmatprep.subr.mxu0 0.0
  %951 = vmatpush1.msra.mxu0 0.0
  %952 = vmatprep.subr.mxu0 0.0
  %953 = vmatpush1.msra.mxu0 0.0
  %954 = vmatprep.subr.mxu0 0.0
  %955 = vmatpush1.msra.mxu0 0.0
  %956 = vmatprep.subr.mxu0 0.0
  %957 = vmatpush1.msra.mxu0 0.0
  %958 = vmatprep.subr.mxu0 0.0
  %959 = vmatpush1.msra.mxu0 0.0
  %960 = vmatprep.subr.mxu0 0.0
  %961 = vmatpush1.msra.mxu0 0.0
  %962 = vmatprep.subr.mxu0 0.0
  %963 = vmatpush1.msra.mxu0 0.0
  %964 = vmatprep.subr.mxu0 0.0
  %965 = vmatpush1.msra.mxu0 0.0
  %966 = vmatprep.subr.mxu0 0.0
  %967 = vmatpush1.msra.mxu0 0.0
  %968 = vmatprep.subr.mxu0 0.0
  %969 = vmatpush1.msra.mxu0 0.0
  %970 = vmatprep.subr.mxu0 0.0
  %971 = vmatpush1.msra.mxu0 0.0
  %972 = vmatprep.mubr.f32.mxu0 0.0
  %973 = vmatmul.mubr.f32.gmra.mrb[0].mxu0 %v223
  %v974 = vpop.f32.mrb[0].mxu0
  %v975 = vadd.f32 0.0, %v974
  %v976 = vpop.f32.mrb[0].mxu0
  %977 = vdwg.mxu0
  %v978 = vadd.f32 %v904, %v975
  %979 = vmatprep.subr.mxu0 0.0
  %980 = vmatpush1.msra.mxu0 %v380
  %981 = vmatprep.subr.mxu0 0.0
  %982 = vmatpush1.msra.mxu0 0.0
  %983 = vmatprep.subr.mxu0 0.0
  %984 = vmatpush1.msra.mxu0 0.0
  %985 = vmatprep.subr.mxu0 0.0
  %986 = vmatpush1.msra.mxu0 0.0
  %987 = vmatprep.subr.mxu0 0.0
  %988 = vmatpush1.msra.mxu0 0.0
  %989 = vmatprep.subr.mxu0 0.0
  %990 = vmatpush1.msra.mxu0 0.0
  %991 = vmatprep.subr.mxu0 0.0
  %992 = vmatpush1.msra.mxu0 0.0
  %993 = vmatprep.subr.mxu0 0.0
  %994 = vmatpush1.msra.mxu0 0.0
  %995 = vmatprep.subr.mxu0 0.0
  %996 = vmatpush1.msra.mxu0 0.0
  %997 = vmatprep.subr.mxu0 0.0
  %998 = vmatpush1.msra.mxu0 0.0
  %999 = vmatprep.subr.mxu0 0.0
  %1000 = vmatpush1.msra.mxu0 0.0
  %1001 = vmatprep.subr.mxu0 0.0
  %1002 = vmatpush1.msra.mxu0 0.0
  %1003 = vmatprep.subr.mxu0 0.0
  %1004 = vmatpush1.msra.mxu0 0.0
  %1005 = vmatprep.subr.mxu0 0.0
  %1006 = vmatpush1.msra.mxu0 0.0
  %1007 = vmatprep.subr.mxu0 0.0
  %1008 = vmatpush1.msra.mxu0 0.0
  %1009 = vmatprep.subr.mxu0 0.0
  %1010 = vmatpush1.msra.mxu0 0.0
  %1011 = vmatprep.subr.mxu0 0.0
  %1012 = vmatpush1.msra.mxu0 0.0
  %1013 = vmatprep.subr.mxu0 0.0
  %1014 = vmatpush1.msra.mxu0 0.0
  %1015 = vmatprep.subr.mxu0 0.0
  %1016 = vmatpush1.msra.mxu0 0.0
  %1017 = vmatprep.subr.mxu0 0.0
  %1018 = vmatpush1.msra.mxu0 0.0
  %1019 = vmatprep.subr.mxu0 0.0
  %1020 = vmatpush1.msra.mxu0 0.0
  %1021 = vmatprep.subr.mxu0 0.0
  %1022 = vmatpush1.msra.mxu0 0.0
  %1023 = vmatprep.subr.mxu0 0.0
  %1024 = vmatpush1.msra.mxu0 0.0
  %1025 = vmatprep.subr.mxu0 0.0
  %1026 = vmatpush1.msra.mxu0 0.0
  %1027 = vmatprep.subr.mxu0 0.0
  %1028 = vmatpush1.msra.mxu0 0.0
  %1029 = vmatprep.subr.mxu0 0.0
  %1030 = vmatpush1.msra.mxu0 0.0
  %1031 = vmatprep.subr.mxu0 0.0
  %1032 = vmatpush1.msra.mxu0 0.0
  %1033 = vmatprep.subr.mxu0 0.0
  %1034 = vmatpush1.msra.mxu0 0.0
  %1035 = vmatprep.subr.mxu0 0.0
  %1036 = vmatpush1.msra.mxu0 0.0
  %1037 = vmatprep.subr.mxu0 0.0
  %1038 = vmatpush1.msra.mxu0 0.0
  %1039 = vmatprep.subr.mxu0 0.0
  %1040 = vmatpush1.msra.mxu0 0.0
  %1041 = vmatprep.subr.mxu0 0.0
  %1042 = vmatpush1.msra.mxu0 0.0
  %1043 = vmatprep.mubr.f32.mxu0 0.0
  %1044 = vmatmul.mubr.f32.gmra.mrb[0].mxu0 %v300
  %v1045 = vpop.f32.mrb[0].mxu0
  %v1046 = vadd.f32 0.0, %v1045
  %v1047 = vpop.f32.mrb[0].mxu0
  %1048 = vdwg.mxu0
  %v1049 = vadd.f32 %v978, %v1046
  %1050 = vmatprep.subr.mxu0 0.0
  %1051 = vmatpush1.msra.mxu0 %v457
  %1052 = vmatprep.subr.mxu0 0.0
  %1053 = vmatpush1.msra.mxu0 0.0
  %1054 = vmatprep.subr.mxu0 0.0
  %1055 = vmatpush1.msra.mxu0 0.0
  %1056 = vmatprep.subr.mxu0 0.0
  %1057 = vmatpush1.msra.mxu0 0.0
  %1058 = vmatprep.subr.mxu0 0.0
  %1059 = vmatpush1.msra.mxu0 0.0
  %1060 = vmatprep.subr.mxu0 0.0
  %1061 = vmatpush1.msra.mxu0 0.0
  %1062 = vmatprep.subr.mxu0 0.0
  %1063 = vmatpush1.msra.mxu0 0.0
  %1064 = vmatprep.subr.mxu0 0.0
  %1065 = vmatpush1.msra.mxu0 0.0
  %1066 = vmatprep.subr.mxu0 0.0
  %1067 = vmatpush1.msra.mxu0 0.0
  %1068 = vmatprep.subr.mxu0 0.0
  %1069 = vmatpush1.msra.mxu0 0.0
  %1070 = vmatprep.subr.mxu0 0.0
  %1071 = vmatpush1.msra.mxu0 0.0
  %1072 = vmatprep.subr.mxu0 0.0
  %1073 = vmatpush1.msra.mxu0 0.0
  %1074 = vmatprep.subr.mxu0 0.0
  %1075 = vmatpush1.msra.mxu0 0.0
  %1076 = vmatprep.subr.mxu0 0.0
  %1077 = vmatpush1.msra.mxu0 0.0
  %1078 = vmatprep.subr.mxu0 0.0
  %1079 = vmatpush1.msra.mxu0 0.0
  %1080 = vmatprep.subr.mxu0 0.0
  %1081 = vmatpush1.msra.mxu0 0.0
  %1082 = vmatprep.subr.mxu0 0.0
  %1083 = vmatpush1.msra.mxu0 0.0
  %1084 = vmatprep.subr.mxu0 0.0
  %1085 = vmatpush1.msra.mxu0 0.0
  %1086 = vmatprep.subr.mxu0 0.0
  %1087 = vmatpush1.msra.mxu0 0.0
  %1088 = vmatprep.subr.mxu0 0.0
  %1089 = vmatpush1.msra.mxu0 0.0
  %1090 = vmatprep.subr.mxu0 0.0
  %1091 = vmatpush1.msra.mxu0 0.0
  %1092 = vmatprep.subr.mxu0 0.0
  %1093 = vmatpush1.msra.mxu0 0.0
  %1094 = vmatprep.subr.mxu0 0.0
  %1095 = vmatpush1.msra.mxu0 0.0
  %1096 = vmatprep.subr.mxu0 0.0
  %1097 = vmatpush1.msra.mxu0 0.0
  %1098 = vmatprep.subr.mxu0 0.0
  %1099 = vmatpush1.msra.mxu0 0.0
  %1100 = vmatprep.subr.mxu0 0.0
  %1101 = vmatpush1.msra.mxu0 0.0
  %1102 = vmatprep.subr.mxu0 0.0
  %1103 = vmatpush1.msra.mxu0 0.0
  %1104 = vmatprep.subr.mxu0 0.0
  %1105 = vmatpush1.msra.mxu0 0.0
  %1106 = vmatprep.subr.mxu0 0.0
  %1107 = vmatpush1.msra.mxu0 0.0
  %1108 = vmatprep.subr.mxu0 0.0
  %1109 = vmatpush1.msra.mxu0 0.0
  %1110 = vmatprep.subr.mxu0 0.0
  %1111 = vmatpush1.msra.mxu0 0.0
  %1112 = vmatprep.subr.mxu0 0.0
  %1113 = vmatpush1.msra.mxu0 0.0
  %1114 = vmatprep.mubr.f32.mxu0 0.0
  %1115 = vmatmul.mubr.f32.gmra.mrb[0].mxu0 %v377
  %v1116 = vpop.f32.mrb[0].mxu0
  %v1117 = vadd.f32 0.0, %v1116
  %v1118 = vpop.f32.mrb[0].mxu0
  %1119 = vdwg.mxu0
  %v1120 = vadd.f32 %v1049, %v1117
  %v1122 = vsel %vm70, %v48, 0
  %1124 = vmatprep.subr.mxu0 0.0
  %1125 = vmatpush1.msra.mxu0 %v1122
  %1126 = vmatprep.subr.mxu0 0.0
  %1127 = vmatpush1.msra.mxu0 0.0
  %1128 = vmatprep.subr.mxu0 0.0
  %1129 = vmatpush1.msra.mxu0 0.0
  %1130 = vmatprep.subr.mxu0 0.0
  %1131 = vmatpush1.msra.mxu0 0.0
  %1132 = vmatprep.subr.mxu0 0.0
  %1133 = vmatpush1.msra.mxu0 0.0
  %1134 = vmatprep.subr.mxu0 0.0
  %1135 = vmatpush1.msra.mxu0 0.0
  %1136 = vmatprep.subr.mxu0 0.0
  %1137 = vmatpush1.msra.mxu0 0.0
  %1138 = vmatprep.subr.mxu0 0.0
  %1139 = vmatpush1.msra.mxu0 0.0
  %1140 = vmatprep.subr.mxu0 0.0
  %1141 = vmatpush1.msra.mxu0 0.0
  %1142 = vmatprep.subr.mxu0 0.0
  %1143 = vmatpush1.msra.mxu0 0.0
  %1144 = vmatprep.subr.mxu0 0.0
  %1145 = vmatpush1.msra.mxu0 0.0
  %1146 = vmatprep.subr.mxu0 0.0
  %1147 = vmatpush1.msra.mxu0 0.0
  %1148 = vmatprep.subr.mxu0 0.0
  %1149 = vmatpush1.msra.mxu0 0.0
  %1150 = vmatprep.subr.mxu0 0.0
  %1151 = vmatpush1.msra.mxu0 0.0
  %1152 = vmatprep.subr.mxu0 0.0
  %1153 = vmatpush1.msra.mxu0 0.0
  %1154 = vmatprep.subr.mxu0 0.0
  %1155 = vmatpush1.msra.mxu0 0.0
  %1156 = vmatprep.subr.mxu0 0.0
  %1157 = vmatpush1.msra.mxu0 0.0
  %1158 = vmatprep.subr.mxu0 0.0
  %1159 = vmatpush1.msra.mxu0 0.0
  %1160 = vmatprep.subr.mxu0 0.0
  %1161 = vmatpush1.msra.mxu0 0.0
  %1162 = vmatprep.subr.mxu0 0.0
  %1163 = vmatpush1.msra.mxu0 0.0
  %1164 = vmatprep.subr.mxu0 0.0
  %1165 = vmatpush1.msra.mxu0 0.0
  %1166 = vmatprep.subr.mxu0 0.0
  %1167 = vmatpush1.msra.mxu0 0.0
  %1168 = vmatprep.subr.mxu0 0.0
  %1169 = vmatpush1.msra.mxu0 0.0
  %1170 = vmatprep.subr.mxu0 0.0
  %1171 = vmatpush1.msra.mxu0 0.0
  %1172 = vmatprep.subr.mxu0 0.0
  %1173 = vmatpush1.msra.mxu0 0.0
  %1174 = vmatprep.subr.mxu0 0.0
  %1175 = vmatpush1.msra.mxu0 0.0
  %1176 = vmatprep.subr.mxu0 0.0
  %1177 = vmatpush1.msra.mxu0 0.0
  %1178 = vmatprep.subr.mxu0 0.0
  %1179 = vmatpush1.msra.mxu0 0.0
  %1180 = vmatprep.subr.mxu0 0.0
  %1181 = vmatpush1.msra.mxu0 0.0
  %1182 = vmatprep.subr.mxu0 0.0
  %1183 = vmatpush1.msra.mxu0 0.0
  %1184 = vmatprep.subr.mxu0 0.0
  %1185 = vmatpush1.msra.mxu0 0.0
  %1186 = vmatprep.subr.mxu0 0.0
  %1187 = vmatpush1.msra.mxu0 0.0
  %1188 = vmatprep.mubr.f32.mxu0 0.0
  %1189 = vmatmul.mubr.f32.gmra.mrb[0].mxu0 %v454
  %v1190 = vpop.f32.mrb[0].mxu0
  %v1191 = vadd.f32 0.0, %v1190
  %v1192 = vpop.f32.mrb[0].mxu0
  %1193 = vdwg.mxu0
  %v1194 = vadd.f32 %v1120, %v1191
  %1195 = vmatprep.subr.mxu0 0.0
  %1196 = vmatpush1.msra.mxu0 %v611
  %1197 = vmatprep.subr.mxu0 0.0
  %1198 = vmatpush1.msra.mxu0 0.0
  %1199 = vmatprep.subr.mxu0 0.0
  %1200 = vmatpush1.msra.mxu0 0.0
  %1201 = vmatprep.subr.mxu0 0.0
  %1202 = vmatpush1.msra.mxu0 0.0
  %1203 = vmatprep.subr.mxu0 0.0
  %1204 = vmatpush1.msra.mxu0 0.0
  %1205 = vmatprep.subr.mxu0 0.0
  %1206 = vmatpush1.msra.mxu0 0.0
  %1207 = vmatprep.subr.mxu0 0.0
  %1208 = vmatpush1.msra.mxu0 0.0
  %1209 = vmatprep.subr.mxu0 0.0
  %1210 = vmatpush1.msra.mxu0 0.0
  %1211 = vmatprep.subr.mxu0 0.0
  %1212 = vmatpush1.msra.mxu0 0.0
  %1213 = vmatprep.subr.mxu0 0.0
  %1214 = vmatpush1.msra.mxu0 0.0
  %1215 = vmatprep.subr.mxu0 0.0
  %1216 = vmatpush1.msra.mxu0 0.0
  %1217 = vmatprep.subr.mxu0 0.0
  %1218 = vmatpush1.msra.mxu0 0.0
  %1219 = vmatprep.subr.mxu0 0.0
  %1220 = vmatpush1.msra.mxu0 0.0
  %1221 = vmatprep.subr.mxu0 0.0
  %1222 = vmatpush1.msra.mxu0 0.0
  %1223 = vmatprep.subr.mxu0 0.0
  %1224 = vmatpush1.msra.mxu0 0.0
  %1225 = vmatprep.subr.mxu0 0.0
  %1226 = vmatpush1.msra.mxu0 0.0
  %1227 = vmatprep.subr.mxu0 0.0
  %1228 = vmatpush1.msra.mxu0 0.0
  %1229 = vmatprep.subr.mxu0 0.0
  %1230 = vmatpush1.msra.mxu0 0.0
  %1231 = vmatprep.subr.mxu0 0.0
  %1232 = vmatpush1.msra.mxu0 0.0
  %1233 = vmatprep.subr.mxu0 0.0
  %1234 = vmatpush1.msra.mxu0 0.0
  %1235 = vmatprep.subr.mxu0 0.0
  %1236 = vmatpush1.msra.mxu0 0.0
  %1237 = vmatprep.subr.mxu0 0.0
  %1238 = vmatpush1.msra.mxu0 0.0
  %1239 = vmatprep.subr.mxu0 0.0
  %1240 = vmatpush1.msra.mxu0 0.0
  %1241 = vmatprep.subr.mxu0 0.0
  %1242 = vmatpush1.msra.mxu0 0.0
  %1243 = vmatprep.subr.mxu0 0.0
  %1244 = vmatpush1.msra.mxu0 0.0
  %1245 = vmatprep.subr.mxu0 0.0
  %1246 = vmatpush1.msra.mxu0 0.0
  %1247 = vmatprep.subr.mxu0 0.0
  %1248 = vmatpush1.msra.mxu0 0.0
  %1249 = vmatprep.subr.mxu0 0.0
  %1250 = vmatpush1.msra.mxu0 0.0
  %1251 = vmatprep.subr.mxu0 0.0
  %1252 = vmatpush1.msra.mxu0 0.0
  %1253 = vmatprep.subr.mxu0 0.0
  %1254 = vmatpush1.msra.mxu0 0.0
  %1255 = vmatprep.subr.mxu0 0.0
  %1256 = vmatpush1.msra.mxu0 0.0
  %1257 = vmatprep.subr.mxu0 0.0
  %1258 = vmatpush1.msra.mxu0 0.0
  %1259 = vmatprep.mubr.f32.mxu0 0.0
  %1260 = vmatmul.mubr.f32.gmra.mrb[0].mxu0 %v531
  %v1261 = vpop.f32.mrb[0].mxu0
  %v1262 = vadd.f32 0.0, %v1261
  %v1263 = vpop.f32.mrb[0].mxu0
  %1264 = vdwg.mxu0
  %v1265 = vadd.f32 %v1194, %v1262
  %1266 = vmatprep.subr.mxu0 0.0
  %1267 = vmatpush1.msra.mxu0 %v688
  %1268 = vmatprep.subr.mxu0 0.0
  %1269 = vmatpush1.msra.mxu0 0.0
  %1270 = vmatprep.subr.mxu0 0.0
  %1271 = vmatpush1.msra.mxu0 0.0
  %1272 = vmatprep.subr.mxu0 0.0
  %1273 = vmatpush1.msra.mxu0 0.0
  %1274 = vmatprep.subr.mxu0 0.0
  %1275 = vmatpush1.msra.mxu0 0.0
  %1276 = vmatprep.subr.mxu0 0.0
  %1277 = vmatpush1.msra.mxu0 0.0
  %1278 = vmatprep.subr.mxu0 0.0
  %1279 = vmatpush1.msra.mxu0 0.0
  %1280 = vmatprep.subr.mxu0 0.0
  %1281 = vmatpush1.msra.mxu0 0.0
  %1282 = vmatprep.subr.mxu0 0.0
  %1283 = vmatpush1.msra.mxu0 0.0
  %1284 = vmatprep.subr.mxu0 0.0
  %1285 = vmatpush1.msra.mxu0 0.0
  %1286 = vmatprep.subr.mxu0 0.0
  %1287 = vmatpush1.msra.mxu0 0.0
  %1288 = vmatprep.subr.mxu0 0.0
  %1289 = vmatpush1.msra.mxu0 0.0
  %1290 = vmatprep.subr.mxu0 0.0
  %1291 = vmatpush1.msra.mxu0 0.0
  %1292 = vmatprep.subr.mxu0 0.0
  %1293 = vmatpush1.msra.mxu0 0.0
  %1294 = vmatprep.subr.mxu0 0.0
  %1295 = vmatpush1.msra.mxu0 0.0
  %1296 = vmatprep.subr.mxu0 0.0
  %1297 = vmatpush1.msra.mxu0 0.0
  %1298 = vmatprep.subr.mxu0 0.0
  %1299 = vmatpush1.msra.mxu0 0.0
  %1300 = vmatprep.subr.mxu0 0.0
  %1301 = vmatpush1.msra.mxu0 0.0
  %1302 = vmatprep.subr.mxu0 0.0
  %1303 = vmatpush1.msra.mxu0 0.0
  %1304 = vmatprep.subr.mxu0 0.0
  %1305 = vmatpush1.msra.mxu0 0.0
  %1306 = vmatprep.subr.mxu0 0.0
  %1307 = vmatpush1.msra.mxu0 0.0
  %1308 = vmatprep.subr.mxu0 0.0
  %1309 = vmatpush1.msra.mxu0 0.0
  %1310 = vmatprep.subr.mxu0 0.0
  %1311 = vmatpush1.msra.mxu0 0.0
  %1312 = vmatprep.subr.mxu0 0.0
  %1313 = vmatpush1.msra.mxu0 0.0
  %1314 = vmatprep.subr.mxu0 0.0
  %1315 = vmatpush1.msra.mxu0 0.0
  %1316 = vmatprep.subr.mxu0 0.0
  %1317 = vmatpush1.msra.mxu0 0.0
  %1318 = vmatprep.subr.mxu0 0.0
  %1319 = vmatpush1.msra.mxu0 0.0
  %1320 = vmatprep.subr.mxu0 0.0
  %1321 = vmatpush1.msra.mxu0 0.0
  %1322 = vmatprep.subr.mxu0 0.0
  %1323 = vmatpush1.msra.mxu0 0.0
  %1324 = vmatprep.subr.mxu0 0.0
  %1325 = vmatpush1.msra.mxu0 0.0
  %1326 = vmatprep.subr.mxu0 0.0
  %1327 = vmatpush1.msra.mxu0 0.0
  %1328 = vmatprep.subr.mxu0 0.0
  %1329 = vmatpush1.msra.mxu0 0.0
  %1330 = vmatprep.mubr.f32.mxu0 0.0
  %1331 = vmatmul.mubr.f32.gmra.mrb[0].mxu0 %v608
  %v1332 = vpop.f32.mrb[0].mxu0
  %v1333 = vadd.f32 0.0, %v1332
  %v1334 = vpop.f32.mrb[0].mxu0
  %1335 = vdwg.mxu0
  %v1336 = vadd.f32 %v1265, %v1333
  %v1338 = vsel %vm70, %v56, 0
  %1340 = vmatprep.subr.mxu0 0.0
  %1341 = vmatpush1.msra.mxu0 %v1338
  %1342 = vmatprep.subr.mxu0 0.0
  %1343 = vmatpush1.msra.mxu0 0.0
  %1344 = vmatprep.subr.mxu0 0.0
  %1345 = vmatpush1.msra.mxu0 0.0
  %1346 = vmatprep.subr.mxu0 0.0
  %1347 = vmatpush1.msra.mxu0 0.0
  %1348 = vmatprep.subr.mxu0 0.0
  %1349 = vmatpush1.msra.mxu0 0.0
  %1350 = vmatprep.subr.mxu0 0.0
  %1351 = vmatpush1.msra.mxu0 0.0
  %1352 = vmatprep.subr.mxu0 0.0
  %1353 = vmatpush1.msra.mxu0 0.0
  %1354 = vmatprep.subr.mxu0 0.0
  %1355 = vmatpush1.msra.mxu0 0.0
  %1356 = vmatprep.subr.mxu0 0.0
  %1357 = vmatpush1.msra.mxu0 0.0
  %1358 = vmatprep.subr.mxu0 0.0
  %1359 = vmatpush1.msra.mxu0 0.0
  %1360 = vmatprep.subr.mxu0 0.0
  %1361 = vmatpush1.msra.mxu0 0.0
  %1362 = vmatprep.subr.mxu0 0.0
  %1363 = vmatpush1.msra.mxu0 0.0
  %1364 = vmatprep.subr.mxu0 0.0
  %1365 = vmatpush1.msra.mxu0 0.0
  %1366 = vmatprep.subr.mxu0 0.0
  %1367 = vmatpush1.msra.mxu0 0.0
  %1368 = vmatprep.subr.mxu0 0.0
  %1369 = vmatpush1.msra.mxu0 0.0
  %1370 = vmatprep.subr.mxu0 0.0
  %1371 = vmatpush1.msra.mxu0 0.0
  %1372 = vmatprep.subr.mxu0 0.0
  %1373 = vmatpush1.msra.mxu0 0.0
  %1374 = vmatprep.subr.mxu0 0.0
  %1375 = vmatpush1.msra.mxu0 0.0
  %1376 = vmatprep.subr.mxu0 0.0
  %1377 = vmatpush1.msra.mxu0 0.0
  %1378 = vmatprep.subr.mxu0 0.0
  %1379 = vmatpush1.msra.mxu0 0.0
  %1380 = vmatprep.subr.mxu0 0.0
  %1381 = vmatpush1.msra.mxu0 0.0
  %1382 = vmatprep.subr.mxu0 0.0
  %1383 = vmatpush1.msra.mxu0 0.0
  %1384 = vmatprep.subr.mxu0 0.0
  %1385 = vmatpush1.msra.mxu0 0.0
  %1386 = vmatprep.subr.mxu0 0.0
  %1387 = vmatpush1.msra.mxu0 0.0
  %1388 = vmatprep.subr.mxu0 0.0
  %1389 = vmatpush1.msra.mxu0 0.0
  %1390 = vmatprep.subr.mxu0 0.0
  %1391 = vmatpush1.msra.mxu0 0.0
  %1392 = vmatprep.subr.mxu0 0.0
  %1393 = vmatpush1.msra.mxu0 0.0
  %1394 = vmatprep.subr.mxu0 0.0
  %1395 = vmatpush1.msra.mxu0 0.0
  %1396 = vmatprep.subr.mxu0 0.0
  %1397 = vmatpush1.msra.mxu0 0.0
  %1398 = vmatprep.subr.mxu0 0.0
  %1399 = vmatpush1.msra.mxu0 0.0
  %1400 = vmatprep.subr.mxu0 0.0
  %1401 = vmatpush1.msra.mxu0 0.0
  %1402 = vmatprep.subr.mxu0 0.0
  %1403 = vmatpush1.msra.mxu0 0.0
  %1404 = vmatprep.mubr.f32.mxu0 0.0
  %1405 = vmatmul.mubr.f32.gmra.mrb[0].mxu0 %v685
  %v1406 = vpop.f32.mrb[0].mxu0
  %v1407 = vadd.f32 0.0, %v1406
  %v1408 = vpop.f32.mrb[0].mxu0
  %1409 = vdwg.mxu0
  %v1410 = vadd.f32 %v1336, %v1407
  %v1411 = vmax.f32 %v760, %v1410
  %s1412 = scalar_lea.vmem %s3, 16
  %v1413 = vld [vmem:[%s1412] sm:$0xff]
  %1414 = vmatprep.subr.mxu0 0.0
  %1415 = vmatpush1.msra.mxu0 %v303
  %1416 = vmatprep.subr.mxu0 0.0
  %1417 = vmatpush1.msra.mxu0 0.0
  %1418 = vmatprep.subr.mxu0 0.0
  %1419 = vmatpush1.msra.mxu0 0.0
  %1420 = vmatprep.subr.mxu0 0.0
  %1421 = vmatpush1.msra.mxu0 0.0
  %1422 = vmatprep.subr.mxu0 0.0
  %1423 = vmatpush1.msra.mxu0 0.0
  %1424 = vmatprep.subr.mxu0 0.0
  %1425 = vmatpush1.msra.mxu0 0.0
  %1426 = vmatprep.subr.mxu0 0.0
  %1427 = vmatpush1.msra.mxu0 0.0
  %1428 = vmatprep.subr.mxu0 0.0
  %1429 = vmatpush1.msra.mxu0 0.0
  %1430 = vmatprep.subr.mxu0 0.0
  %1431 = vmatpush1.msra.mxu0 0.0
  %1432 = vmatprep.subr.mxu0 0.0
  %1433 = vmatpush1.msra.mxu0 0.0
  %1434 = vmatprep.subr.mxu0 0.0
  %1435 = vmatpush1.msra.mxu0 0.0
  %1436 = vmatprep.subr.mxu0 0.0
  %1437 = vmatpush1.msra.mxu0 0.0
  %1438 = vmatprep.subr.mxu0 0.0
  %1439 = vmatpush1.msra.mxu0 0.0
  %1440 = vmatprep.subr.mxu0 0.0
  %1441 = vmatpush1.msra.mxu0 0.0
  %1442 = vmatprep.subr.mxu0 0.0
  %1443 = vmatpush1.msra.mxu0 0.0
  %1444 = vmatprep.subr.mxu0 0.0
  %1445 = vmatpush1.msra.mxu0 0.0
  %1446 = vmatprep.subr.mxu0 0.0
  %1447 = vmatpush1.msra.mxu0 0.0
  %1448 = vmatprep.subr.mxu0 0.0
  %1449 = vmatpush1.msra.mxu0 0.0
  %1450 = vmatprep.subr.mxu0 0.0
  %1451 = vmatpush1.msra.mxu0 0.0
  %1452 = vmatprep.subr.mxu0 0.0
  %1453 = vmatpush1.msra.mxu0 0.0
  %1454 = vmatprep.subr.mxu0 0.0
  %1455 = vmatpush1.msra.mxu0 0.0
  %1456 = vmatprep.subr.mxu0 0.0
  %1457 = vmatpush1.msra.mxu0 0.0
  %1458 = vmatprep.subr.mxu0 0.0
  %1459 = vmatpush1.msra.mxu0 0.0
  %1460 = vmatprep.subr.mxu0 0.0
  %1461 = vmatpush1.msra.mxu0 0.0
  %1462 = vmatprep.subr.mxu0 0.0
  %1463 = vmatpush1.msra.mxu0 0.0
  %1464 = vmatprep.subr.mxu0 0.0
  %1465 = vmatpush1.msra.mxu0 0.0
  %1466 = vmatprep.subr.mxu0 0.0
  %1467 = vmatpush1.msra.mxu0 0.0
  %1468 = vmatprep.subr.mxu0 0.0
  %1469 = vmatpush1.msra.mxu0 0.0
  %1470 = vmatprep.subr.mxu0 0.0
  %1471 = vmatpush1.msra.mxu0 0.0
  %1472 = vmatprep.subr.mxu0 0.0
  %1473 = vmatpush1.msra.mxu0 0.0
  %1474 = vmatprep.subr.mxu0 0.0
  %1475 = vmatpush1.msra.mxu0 0.0
  %1476 = vmatprep.subr.mxu0 0.0
  %1477 = vmatpush1.msra.mxu0 0.0
  %1478 = vmatprep.mubr.f32.mxu0 0.0
  %1479 = vmatmul.mubr.f32.gmra.mrb[0].mxu0 %v68
  %v1480 = vpop.f32.mrb[0].mxu0
  %v1481 = vadd.f32 0.0, %v1480
  %v1482 = vpop.f32.mrb[0].mxu0
  %1483 = vdwg.mxu0
  %v1484 = vadd.f32 %v1413, %v1481
  %1485 = vmatprep.subr.mxu0 0.0
  %1486 = vmatpush1.msra.mxu0 %v380
  %1487 = vmatprep.subr.mxu0 0.0
  %1488 = vmatpush1.msra.mxu0 0.0
  %1489 = vmatprep.subr.mxu0 0.0
  %1490 = vmatpush1.msra.mxu0 0.0
  %1491 = vmatprep.subr.mxu0 0.0
  %1492 = vmatpush1.msra.mxu0 0.0
  %1493 = vmatprep.subr.mxu0 0.0
  %1494 = vmatpush1.msra.mxu0 0.0
  %1495 = vmatprep.subr.mxu0 0.0
  %1496 = vmatpush1.msra.mxu0 0.0
  %1497 = vmatprep.subr.mxu0 0.0
  %1498 = vmatpush1.msra.mxu0 0.0
  %1499 = vmatprep.subr.mxu0 0.0
  %1500 = vmatpush1.msra.mxu0 0.0
  %1501 = vmatprep.subr.mxu0 0.0
  %1502 = vmatpush1.msra.mxu0 0.0
  %1503 = vmatprep.subr.mxu0 0.0
  %1504 = vmatpush1.msra.mxu0 0.0
  %1505 = vmatprep.subr.mxu0 0.0
  %1506 = vmatpush1.msra.mxu0 0.0
  %1507 = vmatprep.subr.mxu0 0.0
  %1508 = vmatpush1.msra.mxu0 0.0
  %1509 = vmatprep.subr.mxu0 0.0
  %1510 = vmatpush1.msra.mxu0 0.0
  %1511 = vmatprep.subr.mxu0 0.0
  %1512 = vmatpush1.msra.mxu0 0.0
  %1513 = vmatprep.subr.mxu0 0.0
  %1514 = vmatpush1.msra.mxu0 0.0
  %1515 = vmatprep.subr.mxu0 0.0
  %1516 = vmatpush1.msra.mxu0 0.0
  %1517 = vmatprep.subr.mxu0 0.0
  %1518 = vmatpush1.msra.mxu0 0.0
  %1519 = vmatprep.subr.mxu0 0.0
  %1520 = vmatpush1.msra.mxu0 0.0
  %1521 = vmatprep.subr.mxu0 0.0
  %1522 = vmatpush1.msra.mxu0 0.0
  %1523 = vmatprep.subr.mxu0 0.0
  %1524 = vmatpush1.msra.mxu0 0.0
  %1525 = vmatprep.subr.mxu0 0.0
  %1526 = vmatpush1.msra.mxu0 0.0
  %1527 = vmatprep.subr.mxu0 0.0
  %1528 = vmatpush1.msra.mxu0 0.0
  %1529 = vmatprep.subr.mxu0 0.0
  %1530 = vmatpush1.msra.mxu0 0.0
  %1531 = vmatprep.subr.mxu0 0.0
  %1532 = vmatpush1.msra.mxu0 0.0
  %1533 = vmatprep.subr.mxu0 0.0
  %1534 = vmatpush1.msra.mxu0 0.0
  %1535 = vmatprep.subr.mxu0 0.0
  %1536 = vmatpush1.msra.mxu0 0.0
  %1537 = vmatprep.subr.mxu0 0.0
  %1538 = vmatpush1.msra.mxu0 0.0
  %1539 = vmatprep.subr.mxu0 0.0
  %1540 = vmatpush1.msra.mxu0 0.0
  %1541 = vmatprep.subr.mxu0 0.0
  %1542 = vmatpush1.msra.mxu0 0.0
  %1543 = vmatprep.subr.mxu0 0.0
  %1544 = vmatpush1.msra.mxu0 0.0
  %1545 = vmatprep.subr.mxu0 0.0
  %1546 = vmatpush1.msra.mxu0 0.0
  %1547 = vmatprep.subr.mxu0 0.0
  %1548 = vmatpush1.msra.mxu0 0.0
  %1549 = vmatprep.mubr.f32.mxu0 0.0
  %1550 = vmatmul.mubr.f32.gmra.mrb[0].mxu0 %v146
  %v1551 = vpop.f32.mrb[0].mxu0
  %v1552 = vadd.f32 0.0, %v1551
  %v1553 = vpop.f32.mrb[0].mxu0
  %1554 = vdwg.mxu0
  %v1555 = vadd.f32 %v1484, %v1552
  %1556 = vmatprep.subr.mxu0 0.0
  %1557 = vmatpush1.msra.mxu0 %v457
  %1558 = vmatprep.subr.mxu0 0.0
  %1559 = vmatpush1.msra.mxu0 0.0
  %1560 = vmatprep.subr.mxu0 0.0
  %1561 = vmatpush1.msra.mxu0 0.0
  %1562 = vmatprep.subr.mxu0 0.0
  %1563 = vmatpush1.msra.mxu0 0.0
  %1564 = vmatprep.subr.mxu0 0.0
  %1565 = vmatpush1.msra.mxu0 0.0
  %1566 = vmatprep.subr.mxu0 0.0
  %1567 = vmatpush1.msra.mxu0 0.0
  %1568 = vmatprep.subr.mxu0 0.0
  %1569 = vmatpush1.msra.mxu0 0.0
  %1570 = vmatprep.subr.mxu0 0.0
  %1571 = vmatpush1.msra.mxu0 0.0
  %1572 = vmatprep.subr.mxu0 0.0
  %1573 = vmatpush1.msra.mxu0 0.0
  %1574 = vmatprep.subr.mxu0 0.0
  %1575 = vmatpush1.msra.mxu0 0.0
  %1576 = vmatprep.subr.mxu0 0.0
  %1577 = vmatpush1.msra.mxu0 0.0
  %1578 = vmatprep.subr.mxu0 0.0
  %1579 = vmatpush1.msra.mxu0 0.0
  %1580 = vmatprep.subr.mxu0 0.0
  %1581 = vmatpush1.msra.mxu0 0.0
  %1582 = vmatprep.subr.mxu0 0.0
  %1583 = vmatpush1.msra.mxu0 0.0
  %1584 = vmatprep.subr.mxu0 0.0
  %1585 = vmatpush1.msra.mxu0 0.0
  %1586 = vmatprep.subr.mxu0 0.0
  %1587 = vmatpush1.msra.mxu0 0.0
  %1588 = vmatprep.subr.mxu0 0.0
  %1589 = vmatpush1.msra.mxu0 0.0
  %1590 = vmatprep.subr.mxu0 0.0
  %1591 = vmatpush1.msra.mxu0 0.0
  %1592 = vmatprep.subr.mxu0 0.0
  %1593 = vmatpush1.msra.mxu0 0.0
  %1594 = vmatprep.subr.mxu0 0.0
  %1595 = vmatpush1.msra.mxu0 0.0
  %1596 = vmatprep.subr.mxu0 0.0
  %1597 = vmatpush1.msra.mxu0 0.0
  %1598 = vmatprep.subr.mxu0 0.0
  %1599 = vmatpush1.msra.mxu0 0.0
  %1600 = vmatprep.subr.mxu0 0.0
  %1601 = vmatpush1.msra.mxu0 0.0
  %1602 = vmatprep.subr.mxu0 0.0
  %1603 = vmatpush1.msra.mxu0 0.0
  %1604 = vmatprep.subr.mxu0 0.0
  %1605 = vmatpush1.msra.mxu0 0.0
  %1606 = vmatprep.subr.mxu0 0.0
  %1607 = vmatpush1.msra.mxu0 0.0
  %1608 = vmatprep.subr.mxu0 0.0
  %1609 = vmatpush1.msra.mxu0 0.0
  %1610 = vmatprep.subr.mxu0 0.0
  %1611 = vmatpush1.msra.mxu0 0.0
  %1612 = vmatprep.subr.mxu0 0.0
  %1613 = vmatpush1.msra.mxu0 0.0
  %1614 = vmatprep.subr.mxu0 0.0
  %1615 = vmatpush1.msra.mxu0 0.0
  %1616 = vmatprep.subr.mxu0 0.0
  %1617 = vmatpush1.msra.mxu0 0.0
  %1618 = vmatprep.subr.mxu0 0.0
  %1619 = vmatpush1.msra.mxu0 0.0
  %1620 = vmatprep.mubr.f32.mxu0 0.0
  %1621 = vmatmul.mubr.f32.gmra.mrb[0].mxu0 %v223
  %v1622 = vpop.f32.mrb[0].mxu0
  %v1623 = vadd.f32 0.0, %v1622
  %v1624 = vpop.f32.mrb[0].mxu0
  %1625 = vdwg.mxu0
  %v1626 = vadd.f32 %v1555, %v1623
  %1627 = vmatprep.subr.mxu0 0.0
  %1628 = vmatpush1.msra.mxu0 %v534
  %1629 = vmatprep.subr.mxu0 0.0
  %1630 = vmatpush1.msra.mxu0 0.0
  %1631 = vmatprep.subr.mxu0 0.0
  %1632 = vmatpush1.msra.mxu0 0.0
  %1633 = vmatprep.subr.mxu0 0.0
  %1634 = vmatpush1.msra.mxu0 0.0
  %1635 = vmatprep.subr.mxu0 0.0
  %1636 = vmatpush1.msra.mxu0 0.0
  %1637 = vmatprep.subr.mxu0 0.0
  %1638 = vmatpush1.msra.mxu0 0.0
  %1639 = vmatprep.subr.mxu0 0.0
  %1640 = vmatpush1.msra.mxu0 0.0
  %1641 = vmatprep.subr.mxu0 0.0
  %1642 = vmatpush1.msra.mxu0 0.0
  %1643 = vmatprep.subr.mxu0 0.0
  %1644 = vmatpush1.msra.mxu0 0.0
  %1645 = vmatprep.subr.mxu0 0.0
  %1646 = vmatpush1.msra.mxu0 0.0
  %1647 = vmatprep.subr.mxu0 0.0
  %1648 = vmatpush1.msra.mxu0 0.0
  %1649 = vmatprep.subr.mxu0 0.0
  %1650 = vmatpush1.msra.mxu0 0.0
  %1651 = vmatprep.subr.mxu0 0.0
  %1652 = vmatpush1.msra.mxu0 0.0
  %1653 = vmatprep.subr.mxu0 0.0
  %1654 = vmatpush1.msra.mxu0 0.0
  %1655 = vmatprep.subr.mxu0 0.0
  %1656 = vmatpush1.msra.mxu0 0.0
  %1657 = vmatprep.subr.mxu0 0.0
  %1658 = vmatpush1.msra.mxu0 0.0
  %1659 = vmatprep.subr.mxu0 0.0
  %1660 = vmatpush1.msra.mxu0 0.0
  %1661 = vmatprep.subr.mxu0 0.0
  %1662 = vmatpush1.msra.mxu0 0.0
  %1663 = vmatprep.subr.mxu0 0.0
  %1664 = vmatpush1.msra.mxu0 0.0
  %1665 = vmatprep.subr.mxu0 0.0
  %1666 = vmatpush1.msra.mxu0 0.0
  %1667 = vmatprep.subr.mxu0 0.0
  %1668 = vmatpush1.msra.mxu0 0.0
  %1669 = vmatprep.subr.mxu0 0.0
  %1670 = vmatpush1.msra.mxu0 0.0
  %1671 = vmatprep.subr.mxu0 0.0
  %1672 = vmatpush1.msra.mxu0 0.0
  %1673 = vmatprep.subr.mxu0 0.0
  %1674 = vmatpush1.msra.mxu0 0.0
  %1675 = vmatprep.subr.mxu0 0.0
  %1676 = vmatpush1.msra.mxu0 0.0
  %1677 = vmatprep.subr.mxu0 0.0
  %1678 = vmatpush1.msra.mxu0 0.0
  %1679 = vmatprep.subr.mxu0 0.0
  %1680 = vmatpush1.msra.mxu0 0.0
  %1681 = vmatprep.subr.mxu0 0.0
  %1682 = vmatpush1.msra.mxu0 0.0
  %1683 = vmatprep.subr.mxu0 0.0
  %1684 = vmatpush1.msra.mxu0 0.0
  %1685 = vmatprep.subr.mxu0 0.0
  %1686 = vmatpush1.msra.mxu0 0.0
  %1687 = vmatprep.subr.mxu0 0.0
  %1688 = vmatpush1.msra.mxu0 0.0
  %1689 = vmatprep.subr.mxu0 0.0
  %1690 = vmatpush1.msra.mxu0 0.0
  %1691 = vmatprep.mubr.f32.mxu0 0.0
  %1692 = vmatmul.mubr.f32.gmra.mrb[0].mxu0 %v300
  %v1693 = vpop.f32.mrb[0].mxu0
  %v1694 = vadd.f32 0.0, %v1693
  %v1695 = vpop.f32.mrb[0].mxu0
  %1696 = vdwg.mxu0
  %v1697 = vadd.f32 %v1626, %v1694
  %1698 = vmatprep.subr.mxu0 0.0
  %1699 = vmatpush1.msra.mxu0 %v611
  %1700 = vmatprep.subr.mxu0 0.0
  %1701 = vmatpush1.msra.mxu0 0.0
  %1702 = vmatprep.subr.mxu0 0.0
  %1703 = vmatpush1.msra.mxu0 0.0
  %1704 = vmatprep.subr.mxu0 0.0
  %1705 = vmatpush1.msra.mxu0 0.0
  %1706 = vmatprep.subr.mxu0 0.0
  %1707 = vmatpush1.msra.mxu0 0.0
  %1708 = vmatprep.subr.mxu0 0.0
  %1709 = vmatpush1.msra.mxu0 0.0
  %1710 = vmatprep.subr.mxu0 0.0
  %1711 = vmatpush1.msra.mxu0 0.0
  %1712 = vmatprep.subr.mxu0 0.0
  %1713 = vmatpush1.msra.mxu0 0.0
  %1714 = vmatprep.subr.mxu0 0.0
  %1715 = vmatpush1.msra.mxu0 0.0
  %1716 = vmatprep.subr.mxu0 0.0
  %1717 = vmatpush1.msra.mxu0 0.0
  %1718 = vmatprep.subr.mxu0 0.0
  %1719 = vmatpush1.msra.mxu0 0.0
  %1720 = vmatprep.subr.mxu0 0.0
  %1721 = vmatpush1.msra.mxu0 0.0
  %1722 = vmatprep.subr.mxu0 0.0
  %1723 = vmatpush1.msra.mxu0 0.0
  %1724 = vmatprep.subr.mxu0 0.0
  %1725 = vmatpush1.msra.mxu0 0.0
  %1726 = vmatprep.subr.mxu0 0.0
  %1727 = vmatpush1.msra.mxu0 0.0
  %1728 = vmatprep.subr.mxu0 0.0
  %1729 = vmatpush1.msra.mxu0 0.0
  %1730 = vmatprep.subr.mxu0 0.0
  %1731 = vmatpush1.msra.mxu0 0.0
  %1732 = vmatprep.subr.mxu0 0.0
  %1733 = vmatpush1.msra.mxu0 0.0
  %1734 = vmatprep.subr.mxu0 0.0
  %1735 = vmatpush1.msra.mxu0 0.0
  %1736 = vmatprep.subr.mxu0 0.0
  %1737 = vmatpush1.msra.mxu0 0.0
  %1738 = vmatprep.subr.mxu0 0.0
  %1739 = vmatpush1.msra.mxu0 0.0
  %1740 = vmatprep.subr.mxu0 0.0
  %1741 = vmatpush1.msra.mxu0 0.0
  %1742 = vmatprep.subr.mxu0 0.0
  %1743 = vmatpush1.msra.mxu0 0.0
  %1744 = vmatprep.subr.mxu0 0.0
  %1745 = vmatpush1.msra.mxu0 0.0
  %1746 = vmatprep.subr.mxu0 0.0
  %1747 = vmatpush1.msra.mxu0 0.0
  %1748 = vmatprep.subr.mxu0 0.0
  %1749 = vmatpush1.msra.mxu0 0.0
  %1750 = vmatprep.subr.mxu0 0.0
  %1751 = vmatpush1.msra.mxu0 0.0
  %1752 = vmatprep.subr.mxu0 0.0
  %1753 = vmatpush1.msra.mxu0 0.0
  %1754 = vmatprep.subr.mxu0 0.0
  %1755 = vmatpush1.msra.mxu0 0.0
  %1756 = vmatprep.subr.mxu0 0.0
  %1757 = vmatpush1.msra.mxu0 0.0
  %1758 = vmatprep.subr.mxu0 0.0
  %1759 = vmatpush1.msra.mxu0 0.0
  %1760 = vmatprep.subr.mxu0 0.0
  %1761 = vmatpush1.msra.mxu0 0.0
  %1762 = vmatprep.mubr.f32.mxu0 0.0
  %1763 = vmatmul.mubr.f32.gmra.mrb[0].mxu0 %v377
  %v1764 = vpop.f32.mrb[0].mxu0
  %v1765 = vadd.f32 0.0, %v1764
  %v1766 = vpop.f32.mrb[0].mxu0
  %1767 = vdwg.mxu0
  %v1768 = vadd.f32 %v1697, %v1765
  %1769 = vmatprep.subr.mxu0 0.0
  %1770 = vmatpush1.msra.mxu0 %v688
  %1771 = vmatprep.subr.mxu0 0.0
  %1772 = vmatpush1.msra.mxu0 0.0
  %1773 = vmatprep.subr.mxu0 0.0
  %1774 = vmatpush1.msra.mxu0 0.0
  %1775 = vmatprep.subr.mxu0 0.0
  %1776 = vmatpush1.msra.mxu0 0.0
  %1777 = vmatprep.subr.mxu0 0.0
  %1778 = vmatpush1.msra.mxu0 0.0
  %1779 = vmatprep.subr.mxu0 0.0
  %1780 = vmatpush1.msra.mxu0 0.0
  %1781 = vmatprep.subr.mxu0 0.0
  %1782 = vmatpush1.msra.mxu0 0.0
  %1783 = vmatprep.subr.mxu0 0.0
  %1784 = vmatpush1.msra.mxu0 0.0
  %1785 = vmatprep.subr.mxu0 0.0
  %1786 = vmatpush1.msra.mxu0 0.0
  %1787 = vmatprep.subr.mxu0 0.0
  %1788 = vmatpush1.msra.mxu0 0.0
  %1789 = vmatprep.subr.mxu0 0.0
  %1790 = vmatpush1.msra.mxu0 0.0
  %1791 = vmatprep.subr.mxu0 0.0
  %1792 = vmatpush1.msra.mxu0 0.0
  %1793 = vmatprep.subr.mxu0 0.0
  %1794 = vmatpush1.msra.mxu0 0.0
  %1795 = vmatprep.subr.mxu0 0.0
  %1796 = vmatpush1.msra.mxu0 0.0
  %1797 = vmatprep.subr.mxu0 0.0
  %1798 = vmatpush1.msra.mxu0 0.0
  %1799 = vmatprep.subr.mxu0 0.0
  %1800 = vmatpush1.msra.mxu0 0.0
  %1801 = vmatprep.subr.mxu0 0.0
  %1802 = vmatpush1.msra.mxu0 0.0
  %1803 = vmatprep.subr.mxu0 0.0
  %1804 = vmatpush1.msra.mxu0 0.0
  %1805 = vmatprep.subr.mxu0 0.0
  %1806 = vmatpush1.msra.mxu0 0.0
  %1807 = vmatprep.subr.mxu0 0.0
  %1808 = vmatpush1.msra.mxu0 0.0
  %1809 = vmatprep.subr.mxu0 0.0
  %1810 = vmatpush1.msra.mxu0 0.0
  %1811 = vmatprep.subr.mxu0 0.0
  %1812 = vmatpush1.msra.mxu0 0.0
  %1813 = vmatprep.subr.mxu0 0.0
  %1814 = vmatpush1.msra.mxu0 0.0
  %1815 = vmatprep.subr.mxu0 0.0
  %1816 = vmatpush1.msra.mxu0 0.0
  %1817 = vmatprep.subr.mxu0 0.0
  %1818 = vmatpush1.msra.mxu0 0.0
  %1819 = vmatprep.subr.mxu0 0.0
  %1820 = vmatpush1.msra.mxu0 0.0
  %1821 = vmatprep.subr.mxu0 0.0
  %1822 = vmatpush1.msra.mxu0 0.0
  %1823 = vmatprep.subr.mxu0 0.0
  %1824 = vmatpush1.msra.mxu0 0.0
  %1825 = vmatprep.subr.mxu0 0.0
  %1826 = vmatpush1.msra.mxu0 0.0
  %1827 = vmatprep.subr.mxu0 0.0
  %1828 = vmatpush1.msra.mxu0 0.0
  %1829 = vmatprep.subr.mxu0 0.0
  %1830 = vmatpush1.msra.mxu0 0.0
  %1831 = vmatprep.subr.mxu0 0.0
  %1832 = vmatpush1.msra.mxu0 0.0
  %1833 = vmatprep.mubr.f32.mxu0 0.0
  %1834 = vmatmul.mubr.f32.gmra.mrb[0].mxu0 %v454
  %v1835 = vpop.f32.mrb[0].mxu0
  %v1836 = vadd.f32 0.0, %v1835
  %v1837 = vpop.f32.mrb[0].mxu0
  %1838 = vdwg.mxu0
  %v1839 = vadd.f32 %v1768, %v1836
  %v1841 = vsel %vm70, %v58, 0
  %1843 = vmatprep.subr.mxu0 0.0
  %1844 = vmatpush1.msra.mxu0 %v1841
  %1845 = vmatprep.subr.mxu0 0.0
  %1846 = vmatpush1.msra.mxu0 0.0
  %1847 = vmatprep.subr.mxu0 0.0
  %1848 = vmatpush1.msra.mxu0 0.0
  %1849 = vmatprep.subr.mxu0 0.0
  %1850 = vmatpush1.msra.mxu0 0.0
  %1851 = vmatprep.subr.mxu0 0.0
  %1852 = vmatpush1.msra.mxu0 0.0
  %1853 = vmatprep.subr.mxu0 0.0
  %1854 = vmatpush1.msra.mxu0 0.0
  %1855 = vmatprep.subr.mxu0 0.0
  %1856 = vmatpush1.msra.mxu0 0.0
  %1857 = vmatprep.subr.mxu0 0.0
  %1858 = vmatpush1.msra.mxu0 0.0
  %1859 = vmatprep.subr.mxu0 0.0
  %1860 = vmatpush1.msra.mxu0 0.0
  %1861 = vmatprep.subr.mxu0 0.0
  %1862 = vmatpush1.msra.mxu0 0.0
  %1863 = vmatprep.subr.mxu0 0.0
  %1864 = vmatpush1.msra.mxu0 0.0
  %1865 = vmatprep.subr.mxu0 0.0
  %1866 = vmatpush1.msra.mxu0 0.0
  %1867 = vmatprep.subr.mxu0 0.0
  %1868 = vmatpush1.msra.mxu0 0.0
  %1869 = vmatprep.subr.mxu0 0.0
  %1870 = vmatpush1.msra.mxu0 0.0
  %1871 = vmatprep.subr.mxu0 0.0
  %1872 = vmatpush1.msra.mxu0 0.0
  %1873 = vmatprep.subr.mxu0 0.0
  %1874 = vmatpush1.msra.mxu0 0.0
  %1875 = vmatprep.subr.mxu0 0.0
  %1876 = vmatpush1.msra.mxu0 0.0
  %1877 = vmatprep.subr.mxu0 0.0
  %1878 = vmatpush1.msra.mxu0 0.0
  %1879 = vmatprep.subr.mxu0 0.0
  %1880 = vmatpush1.msra.mxu0 0.0
  %1881 = vmatprep.subr.mxu0 0.0
  %1882 = vmatpush1.msra.mxu0 0.0
  %1883 = vmatprep.subr.mxu0 0.0
  %1884 = vmatpush1.msra.mxu0 0.0
  %1885 = vmatprep.subr.mxu0 0.0
  %1886 = vmatpush1.msra.mxu0 0.0
  %1887 = vmatprep.subr.mxu0 0.0
  %1888 = vmatpush1.msra.mxu0 0.0
  %1889 = vmatprep.subr.mxu0 0.0
  %1890 = vmatpush1.msra.mxu0 0.0
  %1891 = vmatprep.subr.mxu0 0.0
  %1892 = vmatpush1.msra.mxu0 0.0
  %1893 = vmatprep.subr.mxu0 0.0
  %1894 = vmatpush1.msra.mxu0 0.0
  %1895 = vmatprep.subr.mxu0 0.0
  %1896 = vmatpush1.msra.mxu0 0.0
  %1897 = vmatprep.subr.mxu0 0.0
  %1898 = vmatpush1.msra.mxu0 0.0
  %1899 = vmatprep.subr.mxu0 0.0
  %1900 = vmatpush1.msra.mxu0 0.0
  %1901 = vmatprep.subr.mxu0 0.0
  %1902 = vmatpush1.msra.mxu0 0.0
  %1903 = vmatprep.subr.mxu0 0.0
  %1904 = vmatpush1.msra.mxu0 0.0
  %1905 = vmatprep.subr.mxu0 0.0
  %1906 = vmatpush1.msra.mxu0 0.0
  %1907 = vmatprep.mubr.f32.mxu0 0.0
  %1908 = vmatmul.mubr.f32.gmra.mrb[0].mxu0 %v531
  %v1909 = vpop.f32.mrb[0].mxu0
  %v1910 = vadd.f32 0.0, %v1909
  %v1911 = vpop.f32.mrb[0].mxu0
  %1912 = vdwg.mxu0
  %v1913 = vadd.f32 %v1839, %v1910
  %v1915 = vsel %vm70, %v60, 0
  %1917 = vmatprep.subr.mxu0 0.0
  %1918 = vmatpush1.msra.mxu0 %v1915
  %1919 = vmatprep.subr.mxu0 0.0
  %1920 = vmatpush1.msra.mxu0 0.0
  %1921 = vmatprep.subr.mxu0 0.0
  %1922 = vmatpush1.msra.mxu0 0.0
  %1923 = vmatprep.subr.mxu0 0.0
  %1924 = vmatpush1.msra.mxu0 0.0
  %1925 = vmatprep.subr.mxu0 0.0
  %1926 = vmatpush1.msra.mxu0 0.0
  %1927 = vmatprep.subr.mxu0 0.0
  %1928 = vmatpush1.msra.mxu0 0.0
  %1929 = vmatprep.subr.mxu0 0.0
  %1930 = vmatpush1.msra.mxu0 0.0
  %1931 = vmatprep.subr.mxu0 0.0
  %1932 = vmatpush1.msra.mxu0 0.0
  %1933 = vmatprep.subr.mxu0 0.0
  %1934 = vmatpush1.msra.mxu0 0.0
  %1935 = vmatprep.subr.mxu0 0.0
  %1936 = vmatpush1.msra.mxu0 0.0
  %1937 = vmatprep.subr.mxu0 0.0
  %1938 = vmatpush1.msra.mxu0 0.0
  %1939 = vmatprep.subr.mxu0 0.0
  %1940 = vmatpush1.msra.mxu0 0.0
  %1941 = vmatprep.subr.mxu0 0.0
  %1942 = vmatpush1.msra.mxu0 0.0
  %1943 = vmatprep.subr.mxu0 0.0
  %1944 = vmatpush1.msra.mxu0 0.0
  %1945 = vmatprep.subr.mxu0 0.0
  %1946 = vmatpush1.msra.mxu0 0.0
  %1947 = vmatprep.subr.mxu0 0.0
  %1948 = vmatpush1.msra.mxu0 0.0
  %1949 = vmatprep.subr.mxu0 0.0
  %1950 = vmatpush1.msra.mxu0 0.0
  %1951 = vmatprep.subr.mxu0 0.0
  %1952 = vmatpush1.msra.mxu0 0.0
  %1953 = vmatprep.subr.mxu0 0.0
  %1954 = vmatpush1.msra.mxu0 0.0
  %1955 = vmatprep.subr.mxu0 0.0
  %1956 = vmatpush1.msra.mxu0 0.0
  %1957 = vmatprep.subr.mxu0 0.0
  %1958 = vmatpush1.msra.mxu0 0.0
  %1959 = vmatprep.subr.mxu0 0.0
  %1960 = vmatpush1.msra.mxu0 0.0
  %1961 = vmatprep.subr.mxu0 0.0
  %1962 = vmatpush1.msra.mxu0 0.0
  %1963 = vmatprep.subr.mxu0 0.0
  %1964 = vmatpush1.msra.mxu0 0.0
  %1965 = vmatprep.subr.mxu0 0.0
  %1966 = vmatpush1.msra.mxu0 0.0
  %1967 = vmatprep.subr.mxu0 0.0
  %1968 = vmatpush1.msra.mxu0 0.0
  %1969 = vmatprep.subr.mxu0 0.0
  %1970 = vmatpush1.msra.mxu0 0.0
  %1971 = vmatprep.subr.mxu0 0.0
  %1972 = vmatpush1.msra.mxu0 0.0
  %1973 = vmatprep.subr.mxu0 0.0
  %1974 = vmatpush1.msra.mxu0 0.0
  %1975 = vmatprep.subr.mxu0 0.0
  %1976 = vmatpush1.msra.mxu0 0.0
  %1977 = vmatprep.subr.mxu0 0.0
  %1978 = vmatpush1.msra.mxu0 0.0
  %1979 = vmatprep.subr.mxu0 0.0
  %1980 = vmatpush1.msra.mxu0 0.0
  %1981 = vmatprep.mubr.f32.mxu0 0.0
  %1982 = vmatmul.mubr.f32.gmra.mrb[0].mxu0 %v608
  %v1983 = vpop.f32.mrb[0].mxu0
  %v1984 = vadd.f32 0.0, %v1983
  %v1985 = vpop.f32.mrb[0].mxu0
  %1986 = vdwg.mxu0
  %v1987 = vadd.f32 %v1913, %v1984
  %v1989 = vsel %vm70, %v62, 0
  %1991 = vmatprep.subr.mxu0 0.0
  %1992 = vmatpush1.msra.mxu0 %v1989
  %1993 = vmatprep.subr.mxu0 0.0
  %1994 = vmatpush1.msra.mxu0 0.0
  %1995 = vmatprep.subr.mxu0 0.0
  %1996 = vmatpush1.msra.mxu0 0.0
  %1997 = vmatprep.subr.mxu0 0.0
  %1998 = vmatpush1.msra.mxu0 0.0
  %1999 = vmatprep.subr.mxu0 0.0
  %2000 = vmatpush1.msra.mxu0 0.0
  %2001 = vmatprep.subr.mxu0 0.0
  %2002 = vmatpush1.msra.mxu0 0.0
  %2003 = vmatprep.subr.mxu0 0.0
  %2004 = vmatpush1.msra.mxu0 0.0
  %2005 = vmatprep.subr.mxu0 0.0
  %2006 = vmatpush1.msra.mxu0 0.0
  %2007 = vmatprep.subr.mxu0 0.0
  %2008 = vmatpush1.msra.mxu0 0.0
  %2009 = vmatprep.subr.mxu0 0.0
  %2010 = vmatpush1.msra.mxu0 0.0
  %2011 = vmatprep.subr.mxu0 0.0
  %2012 = vmatpush1.msra.mxu0 0.0
  %2013 = vmatprep.subr.mxu0 0.0
  %2014 = vmatpush1.msra.mxu0 0.0
  %2015 = vmatprep.subr.mxu0 0.0
  %2016 = vmatpush1.msra.mxu0 0.0
  %2017 = vmatprep.subr.mxu0 0.0
  %2018 = vmatpush1.msra.mxu0 0.0
  %2019 = vmatprep.subr.mxu0 0.0
  %2020 = vmatpush1.msra.mxu0 0.0
  %2021 = vmatprep.subr.mxu0 0.0
  %2022 = vmatpush1.msra.mxu0 0.0
  %2023 = vmatprep.subr.mxu0 0.0
  %2024 = vmatpush1.msra.mxu0 0.0
  %2025 = vmatprep.subr.mxu0 0.0
  %2026 = vmatpush1.msra.mxu0 0.0
  %2027 = vmatprep.subr.mxu0 0.0
  %2028 = vmatpush1.msra.mxu0 0.0
  %2029 = vmatprep.subr.mxu0 0.0
  %2030 = vmatpush1.msra.mxu0 0.0
  %2031 = vmatprep.subr.mxu0 0.0
  %2032 = vmatpush1.msra.mxu0 0.0
  %2033 = vmatprep.subr.mxu0 0.0
  %2034 = vmatpush1.msra.mxu0 0.0
  %2035 = vmatprep.subr.mxu0 0.0
  %2036 = vmatpush1.msra.mxu0 0.0
  %2037 = vmatprep.subr.mxu0 0.0
  %2038 = vmatpush1.msra.mxu0 0.0
  %2039 = vmatprep.subr.mxu0 0.0
  %2040 = vmatpush1.msra.mxu0 0.0
  %2041 = vmatprep.subr.mxu0 0.0
  %2042 = vmatpush1.msra.mxu0 0.0
  %2043 = vmatprep.subr.mxu0 0.0
  %2044 = vmatpush1.msra.mxu0 0.0
  %2045 = vmatprep.subr.mxu0 0.0
  %2046 = vmatpush1.msra.mxu0 0.0
  %2047 = vmatprep.subr.mxu0 0.0
  %2048 = vmatpush1.msra.mxu0 0.0
  %2049 = vmatprep.subr.mxu0 0.0
  %2050 = vmatpush1.msra.mxu0 0.0
  %2051 = vmatprep.subr.mxu0 0.0
  %2052 = vmatpush1.msra.mxu0 0.0
  %2053 = vmatprep.subr.mxu0 0.0
  %2054 = vmatpush1.msra.mxu0 0.0
  %2055 = vmatprep.mubr.f32.mxu0 0.0
  %2056 = vmatmul.mubr.f32.gmra.mrb[0].mxu0 %v685
  %v2057 = vpop.f32.mrb[0].mxu0
  %v2058 = vadd.f32 0.0, %v2057
  %v2059 = vpop.f32.mrb[0].mxu0
  %2060 = vdwg.mxu0
  %v2061 = vadd.f32 %v1987, %v2058
  %v2062 = vmax.f32 %v1411, %v2061
  %s2063 = scalar_lea.vmem %s3, 24
  %v2064 = vld [vmem:[%s2063] sm:$0xff]
  %2065 = vmatprep.subr.mxu0 0.0
  %2066 = vmatpush1.msra.mxu0 %v380
  %2067 = vmatprep.subr.mxu0 0.0
  %2068 = vmatpush1.msra.mxu0 0.0
  %2069 = vmatprep.subr.mxu0 0.0
  %2070 = vmatpush1.msra.mxu0 0.0
  %2071 = vmatprep.subr.mxu0 0.0
  %2072 = vmatpush1.msra.mxu0 0.0
  %2073 = vmatprep.subr.mxu0 0.0
  %2074 = vmatpush1.msra.mxu0 0.0
  %2075 = vmatprep.subr.mxu0 0.0
  %2076 = vmatpush1.msra.mxu0 0.0
  %2077 = vmatprep.subr.mxu0 0.0
  %2078 = vmatpush1.msra.mxu0 0.0
  %2079 = vmatprep.subr.mxu0 0.0
  %2080 = vmatpush1.msra.mxu0 0.0
  %2081 = vmatprep.subr.mxu0 0.0
  %2082 = vmatpush1.msra.mxu0 0.0
  %2083 = vmatprep.subr.mxu0 0.0
  %2084 = vmatpush1.msra.mxu0 0.0
  %2085 = vmatprep.subr.mxu0 0.0
  %2086 = vmatpush1.msra.mxu0 0.0
  %2087 = vmatprep.subr.mxu0 0.0
  %2088 = vmatpush1.msra.mxu0 0.0
  %2089 = vmatprep.subr.mxu0 0.0
  %2090 = vmatpush1.msra.mxu0 0.0
  %2091 = vmatprep.subr.mxu0 0.0
  %2092 = vmatpush1.msra.mxu0 0.0
  %2093 = vmatprep.subr.mxu0 0.0
  %2094 = vmatpush1.msra.mxu0 0.0
  %2095 = vmatprep.subr.mxu0 0.0
  %2096 = vmatpush1.msra.mxu0 0.0
  %2097 = vmatprep.subr.mxu0 0.0
  %2098 = vmatpush1.msra.mxu0 0.0
  %2099 = vmatprep.subr.mxu0 0.0
  %2100 = vmatpush1.msra.mxu0 0.0
  %2101 = vmatprep.subr.mxu0 0.0
  %2102 = vmatpush1.msra.mxu0 0.0
  %2103 = vmatprep.subr.mxu0 0.0
  %2104 = vmatpush1.msra.mxu0 0.0
  %2105 = vmatprep.subr.mxu0 0.0
  %2106 = vmatpush1.msra.mxu0 0.0
  %2107 = vmatprep.subr.mxu0 0.0
  %2108 = vmatpush1.msra.mxu0 0.0
  %2109 = vmatprep.subr.mxu0 0.0
  %2110 = vmatpush1.msra.mxu0 0.0
  %2111 = vmatprep.subr.mxu0 0.0
  %2112 = vmatpush1.msra.mxu0 0.0
  %2113 = vmatprep.subr.mxu0 0.0
  %2114 = vmatpush1.msra.mxu0 0.0
  %2115 = vmatprep.subr.mxu0 0.0
  %2116 = vmatpush1.msra.mxu0 0.0
  %2117 = vmatprep.subr.mxu0 0.0
  %2118 = vmatpush1.msra.mxu0 0.0
  %2119 = vmatprep.subr.mxu0 0.0
  %2120 = vmatpush1.msra.mxu0 0.0
  %2121 = vmatprep.subr.mxu0 0.0
  %2122 = vmatpush1.msra.mxu0 0.0
  %2123 = vmatprep.subr.mxu0 0.0
  %2124 = vmatpush1.msra.mxu0 0.0
  %2125 = vmatprep.subr.mxu0 0.0
  %2126 = vmatpush1.msra.mxu0 0.0
  %2127 = vmatprep.subr.mxu0 0.0
  %2128 = vmatpush1.msra.mxu0 0.0
  %2129 = vmatprep.mubr.f32.mxu0 0.0
  %2130 = vmatmul.mubr.f32.gmra.mrb[0].mxu0 %v68
  %v2131 = vpop.f32.mrb[0].mxu0
  %v2132 = vadd.f32 0.0, %v2131
  %v2133 = vpop.f32.mrb[0].mxu0
  %2134 = vdwg.mxu0
  %v2135 = vadd.f32 %v2064, %v2132
  %2136 = vmatprep.subr.mxu0 0.0
  %2137 = vmatpush1.msra.mxu0 %v457
  %2138 = vmatprep.subr.mxu0 0.0
  %2139 = vmatpush1.msra.mxu0 0.0
  %2140 = vmatprep.subr.mxu0 0.0
  %2141 = vmatpush1.msra.mxu0 0.0
  %2142 = vmatprep.subr.mxu0 0.0
  %2143 = vmatpush1.msra.mxu0 0.0
  %2144 = vmatprep.subr.mxu0 0.0
  %2145 = vmatpush1.msra.mxu0 0.0
  %2146 = vmatprep.subr.mxu0 0.0
  %2147 = vmatpush1.msra.mxu0 0.0
  %2148 = vmatprep.subr.mxu0 0.0
  %2149 = vmatpush1.msra.mxu0 0.0
  %2150 = vmatprep.subr.mxu0 0.0
  %2151 = vmatpush1.msra.mxu0 0.0
  %2152 = vmatprep.subr.mxu0 0.0
  %2153 = vmatpush1.msra.mxu0 0.0
  %2154 = vmatprep.subr.mxu0 0.0
  %2155 = vmatpush1.msra.mxu0 0.0
  %2156 = vmatprep.subr.mxu0 0.0
  %2157 = vmatpush1.msra.mxu0 0.0
  %2158 = vmatprep.subr.mxu0 0.0
  %2159 = vmatpush1.msra.mxu0 0.0
  %2160 = vmatprep.subr.mxu0 0.0
  %2161 = vmatpush1.msra.mxu0 0.0
  %2162 = vmatprep.subr.mxu0 0.0
  %2163 = vmatpush1.msra.mxu0 0.0
  %2164 = vmatprep.subr.mxu0 0.0
  %2165 = vmatpush1.msra.mxu0 0.0
  %2166 = vmatprep.subr.mxu0 0.0
  %2167 = vmatpush1.msra.mxu0 0.0
  %2168 = vmatprep.subr.mxu0 0.0
  %2169 = vmatpush1.msra.mxu0 0.0
  %2170 = vmatprep.subr.mxu0 0.0
  %2171 = vmatpush1.msra.mxu0 0.0
  %2172 = vmatprep.subr.mxu0 0.0
  %2173 = vmatpush1.msra.mxu0 0.0
  %2174 = vmatprep.subr.mxu0 0.0
  %2175 = vmatpush1.msra.mxu0 0.0
  %2176 = vmatprep.subr.mxu0 0.0
  %2177 = vmatpush1.msra.mxu0 0.0
  %2178 = vmatprep.subr.mxu0 0.0
  %2179 = vmatpush1.msra.mxu0 0.0
  %2180 = vmatprep.subr.mxu0 0.0
  %2181 = vmatpush1.msra.mxu0 0.0
  %2182 = vmatprep.subr.mxu0 0.0
  %2183 = vmatpush1.msra.mxu0 0.0
  %2184 = vmatprep.subr.mxu0 0.0
  %2185 = vmatpush1.msra.mxu0 0.0
  %2186 = vmatprep.subr.mxu0 0.0
  %2187 = vmatpush1.msra.mxu0 0.0
  %2188 = vmatprep.subr.mxu0 0.0
  %2189 = vmatpush1.msra.mxu0 0.0
  %2190 = vmatprep.subr.mxu0 0.0
  %2191 = vmatpush1.msra.mxu0 0.0
  %2192 = vmatprep.subr.mxu0 0.0
  %2193 = vmatpush1.msra.mxu0 0.0
  %2194 = vmatprep.subr.mxu0 0.0
  %2195 = vmatpush1.msra.mxu0 0.0
  %2196 = vmatprep.subr.mxu0 0.0
  %2197 = vmatpush1.msra.mxu0 0.0
  %2198 = vmatprep.subr.mxu0 0.0
  %2199 = vmatpush1.msra.mxu0 0.0
  %2200 = vmatprep.mubr.f32.mxu0 0.0
  %2201 = vmatmul.mubr.f32.gmra.mrb[0].mxu0 %v146
  %v2202 = vpop.f32.mrb[0].mxu0
  %v2203 = vadd.f32 0.0, %v2202
  %v2204 = vpop.f32.mrb[0].mxu0
  %2205 = vdwg.mxu0
  %v2206 = vadd.f32 %v2135, %v2203
  %2207 = vmatprep.subr.mxu0 0.0
  %2208 = vmatpush1.msra.mxu0 %v1122
  %2209 = vmatprep.subr.mxu0 0.0
  %2210 = vmatpush1.msra.mxu0 0.0
  %2211 = vmatprep.subr.mxu0 0.0
  %2212 = vmatpush1.msra.mxu0 0.0
  %2213 = vmatprep.subr.mxu0 0.0
  %2214 = vmatpush1.msra.mxu0 0.0
  %2215 = vmatprep.subr.mxu0 0.0
  %2216 = vmatpush1.msra.mxu0 0.0
  %2217 = vmatprep.subr.mxu0 0.0
  %2218 = vmatpush1.msra.mxu0 0.0
  %2219 = vmatprep.subr.mxu0 0.0
  %2220 = vmatpush1.msra.mxu0 0.0
  %2221 = vmatprep.subr.mxu0 0.0
  %2222 = vmatpush1.msra.mxu0 0.0
  %2223 = vmatprep.subr.mxu0 0.0
  %2224 = vmatpush1.msra.mxu0 0.0
  %2225 = vmatprep.subr.mxu0 0.0
  %2226 = vmatpush1.msra.mxu0 0.0
  %2227 = vmatprep.subr.mxu0 0.0
  %2228 = vmatpush1.msra.mxu0 0.0
  %2229 = vmatprep.subr.mxu0 0.0
  %2230 = vmatpush1.msra.mxu0 0.0
  %2231 = vmatprep.subr.mxu0 0.0
  %2232 = vmatpush1.msra.mxu0 0.0
  %2233 = vmatprep.subr.mxu0 0.0
  %2234 = vmatpush1.msra.mxu0 0.0
  %2235 = vmatprep.subr.mxu0 0.0
  %2236 = vmatpush1.msra.mxu0 0.0
  %2237 = vmatprep.subr.mxu0 0.0
  %2238 = vmatpush1.msra.mxu0 0.0
  %2239 = vmatprep.subr.mxu0 0.0
  %2240 = vmatpush1.msra.mxu0 0.0
  %2241 = vmatprep.subr.mxu0 0.0
  %2242 = vmatpush1.msra.mxu0 0.0
  %2243 = vmatprep.subr.mxu0 0.0
  %2244 = vmatpush1.msra.mxu0 0.0
  %2245 = vmatprep.subr.mxu0 0.0
  %2246 = vmatpush1.msra.mxu0 0.0
  %2247 = vmatprep.subr.mxu0 0.0
  %2248 = vmatpush1.msra.mxu0 0.0
  %2249 = vmatprep.subr.mxu0 0.0
  %2250 = vmatpush1.msra.mxu0 0.0
  %2251 = vmatprep.subr.mxu0 0.0
  %2252 = vmatpush1.msra.mxu0 0.0
  %2253 = vmatprep.subr.mxu0 0.0
  %2254 = vmatpush1.msra.mxu0 0.0
  %2255 = vmatprep.subr.mxu0 0.0
  %2256 = vmatpush1.msra.mxu0 0.0
  %2257 = vmatprep.subr.mxu0 0.0
  %2258 = vmatpush1.msra.mxu0 0.0
  %2259 = vmatprep.subr.mxu0 0.0
  %2260 = vmatpush1.msra.mxu0 0.0
  %2261 = vmatprep.subr.mxu0 0.0
  %2262 = vmatpush1.msra.mxu0 0.0
  %2263 = vmatprep.subr.mxu0 0.0
  %2264 = vmatpush1.msra.mxu0 0.0
  %2265 = vmatprep.subr.mxu0 0.0
  %2266 = vmatpush1.msra.mxu0 0.0
  %2267 = vmatprep.subr.mxu0 0.0
  %2268 = vmatpush1.msra.mxu0 0.0
  %2269 = vmatprep.subr.mxu0 0.0
  %2270 = vmatpush1.msra.mxu0 0.0
  %2271 = vmatprep.mubr.f32.mxu0 0.0
  %2272 = vmatmul.mubr.f32.gmra.mrb[0].mxu0 %v223
  %v2273 = vpop.f32.mrb[0].mxu0
  %v2274 = vadd.f32 0.0, %v2273
  %v2275 = vpop.f32.mrb[0].mxu0
  %2276 = vdwg.mxu0
  %v2277 = vadd.f32 %v2206, %v2274
  %2278 = vmatprep.subr.mxu0 0.0
  %2279 = vmatpush1.msra.mxu0 %v611
  %2280 = vmatprep.subr.mxu0 0.0
  %2281 = vmatpush1.msra.mxu0 0.0
  %2282 = vmatprep.subr.mxu0 0.0
  %2283 = vmatpush1.msra.mxu0 0.0
  %2284 = vmatprep.subr.mxu0 0.0
  %2285 = vmatpush1.msra.mxu0 0.0
  %2286 = vmatprep.subr.mxu0 0.0
  %2287 = vmatpush1.msra.mxu0 0.0
  %2288 = vmatprep.subr.mxu0 0.0
  %2289 = vmatpush1.msra.mxu0 0.0
  %2290 = vmatprep.subr.mxu0 0.0
  %2291 = vmatpush1.msra.mxu0 0.0
  %2292 = vmatprep.subr.mxu0 0.0
  %2293 = vmatpush1.msra.mxu0 0.0
  %2294 = vmatprep.subr.mxu0 0.0
  %2295 = vmatpush1.msra.mxu0 0.0
  %2296 = vmatprep.subr.mxu0 0.0
  %2297 = vmatpush1.msra.mxu0 0.0
  %2298 = vmatprep.subr.mxu0 0.0
  %2299 = vmatpush1.msra.mxu0 0.0
  %2300 = vmatprep.subr.mxu0 0.0
  %2301 = vmatpush1.msra.mxu0 0.0
  %2302 = vmatprep.subr.mxu0 0.0
  %2303 = vmatpush1.msra.mxu0 0.0
  %2304 = vmatprep.subr.mxu0 0.0
  %2305 = vmatpush1.msra.mxu0 0.0
  %2306 = vmatprep.subr.mxu0 0.0
  %2307 = vmatpush1.msra.mxu0 0.0
  %2308 = vmatprep.subr.mxu0 0.0
  %2309 = vmatpush1.msra.mxu0 0.0
  %2310 = vmatprep.subr.mxu0 0.0
  %2311 = vmatpush1.msra.mxu0 0.0
  %2312 = vmatprep.subr.mxu0 0.0
  %2313 = vmatpush1.msra.mxu0 0.0
  %2314 = vmatprep.subr.mxu0 0.0
  %2315 = vmatpush1.msra.mxu0 0.0
  %2316 = vmatprep.subr.mxu0 0.0
  %2317 = vmatpush1.msra.mxu0 0.0
  %2318 = vmatprep.subr.mxu0 0.0
  %2319 = vmatpush1.msra.mxu0 0.0
  %2320 = vmatprep.subr.mxu0 0.0
  %2321 = vmatpush1.msra.mxu0 0.0
  %2322 = vmatprep.subr.mxu0 0.0
  %2323 = vmatpush1.msra.mxu0 0.0
  %2324 = vmatprep.subr.mxu0 0.0
  %2325 = vmatpush1.msra.mxu0 0.0
  %2326 = vmatprep.subr.mxu0 0.0
  %2327 = vmatpush1.msra.mxu0 0.0
  %2328 = vmatprep.subr.mxu0 0.0
  %2329 = vmatpush1.msra.mxu0 0.0
  %2330 = vmatprep.subr.mxu0 0.0
  %2331 = vmatpush1.msra.mxu0 0.0
  %2332 = vmatprep.subr.mxu0 0.0
  %2333 = vmatpush1.msra.mxu0 0.0
  %2334 = vmatprep.subr.mxu0 0.0
  %2335 = vmatpush1.msra.mxu0 0.0
  %2336 = vmatprep.subr.mxu0 0.0
  %2337 = vmatpush1.msra.mxu0 0.0
  %2338 = vmatprep.subr.mxu0 0.0
  %2339 = vmatpush1.msra.mxu0 0.0
  %2340 = vmatprep.subr.mxu0 0.0
  %2341 = vmatpush1.msra.mxu0 0.0
  %2342 = vmatprep.mubr.f32.mxu0 0.0
  %2343 = vmatmul.mubr.f32.gmra.mrb[0].mxu0 %v300
  %v2344 = vpop.f32.mrb[0].mxu0
  %v2345 = vadd.f32 0.0, %v2344
  %v2346 = vpop.f32.mrb[0].mxu0
  %2347 = vdwg.mxu0
  %v2348 = vadd.f32 %v2277, %v2345
  %2349 = vmatprep.subr.mxu0 0.0
  %2350 = vmatpush1.msra.mxu0 %v688
  %2351 = vmatprep.subr.mxu0 0.0
  %2352 = vmatpush1.msra.mxu0 0.0
  %2353 = vmatprep.subr.mxu0 0.0
  %2354 = vmatpush1.msra.mxu0 0.0
  %2355 = vmatprep.subr.mxu0 0.0
  %2356 = vmatpush1.msra.mxu0 0.0
  %2357 = vmatprep.subr.mxu0 0.0
  %2358 = vmatpush1.msra.mxu0 0.0
  %2359 = vmatprep.subr.mxu0 0.0
  %2360 = vmatpush1.msra.mxu0 0.0
  %2361 = vmatprep.subr.mxu0 0.0
  %2362 = vmatpush1.msra.mxu0 0.0
  %2363 = vmatprep.subr.mxu0 0.0
  %2364 = vmatpush1.msra.mxu0 0.0
  %2365 = vmatprep.subr.mxu0 0.0
  %2366 = vmatpush1.msra.mxu0 0.0
  %2367 = vmatprep.subr.mxu0 0.0
  %2368 = vmatpush1.msra.mxu0 0.0
  %2369 = vmatprep.subr.mxu0 0.0
  %2370 = vmatpush1.msra.mxu0 0.0
  %2371 = vmatprep.subr.mxu0 0.0
  %2372 = vmatpush1.msra.mxu0 0.0
  %2373 = vmatprep.subr.mxu0 0.0
  %2374 = vmatpush1.msra.mxu0 0.0
  %2375 = vmatprep.subr.mxu0 0.0
  %2376 = vmatpush1.msra.mxu0 0.0
  %2377 = vmatprep.subr.mxu0 0.0
  %2378 = vmatpush1.msra.mxu0 0.0
  %2379 = vmatprep.subr.mxu0 0.0
  %2380 = vmatpush1.msra.mxu0 0.0
  %2381 = vmatprep.subr.mxu0 0.0
  %2382 = vmatpush1.msra.mxu0 0.0
  %2383 = vmatprep.subr.mxu0 0.0
  %2384 = vmatpush1.msra.mxu0 0.0
  %2385 = vmatprep.subr.mxu0 0.0
  %2386 = vmatpush1.msra.mxu0 0.0
  %2387 = vmatprep.subr.mxu0 0.0
  %2388 = vmatpush1.msra.mxu0 0.0
  %2389 = vmatprep.subr.mxu0 0.0
  %2390 = vmatpush1.msra.mxu0 0.0
  %2391 = vmatprep.subr.mxu0 0.0
  %2392 = vmatpush1.msra.mxu0 0.0
  %2393 = vmatprep.subr.mxu0 0.0
  %2394 = vmatpush1.msra.mxu0 0.0
  %2395 = vmatprep.subr.mxu0 0.0
  %2396 = vmatpush1.msra.mxu0 0.0
  %2397 = vmatprep.subr.mxu0 0.0
  %2398 = vmatpush1.msra.mxu0 0.0
  %2399 = vmatprep.subr.mxu0 0.0
  %2400 = vmatpush1.msra.mxu0 0.0
  %2401 = vmatprep.subr.mxu0 0.0
  %2402 = vmatpush1.msra.mxu0 0.0
  %2403 = vmatprep.subr.mxu0 0.0
  %2404 = vmatpush1.msra.mxu0 0.0
  %2405 = vmatprep.subr.mxu0 0.0
  %2406 = vmatpush1.msra.mxu0 0.0
  %2407 = vmatprep.subr.mxu0 0.0
  %2408 = vmatpush1.msra.mxu0 0.0
  %2409 = vmatprep.subr.mxu0 0.0
  %2410 = vmatpush1.msra.mxu0 0.0
  %2411 = vmatprep.subr.mxu0 0.0
  %2412 = vmatpush1.msra.mxu0 0.0
  %2413 = vmatprep.mubr.f32.mxu0 0.0
  %2414 = vmatmul.mubr.f32.gmra.mrb[0].mxu0 %v377
  %v2415 = vpop.f32.mrb[0].mxu0
  %v2416 = vadd.f32 0.0, %v2415
  %v2417 = vpop.f32.mrb[0].mxu0
  %2418 = vdwg.mxu0
  %v2419 = vadd.f32 %v2348, %v2416
  %2420 = vmatprep.subr.mxu0 0.0
  %2421 = vmatpush1.msra.mxu0 %v1338
  %2422 = vmatprep.subr.mxu0 0.0
  %2423 = vmatpush1.msra.mxu0 0.0
  %2424 = vmatprep.subr.mxu0 0.0
  %2425 = vmatpush1.msra.mxu0 0.0
  %2426 = vmatprep.subr.mxu0 0.0
  %2427 = vmatpush1.msra.mxu0 0.0
  %2428 = vmatprep.subr.mxu0 0.0
  %2429 = vmatpush1.msra.mxu0 0.0
  %2430 = vmatprep.subr.mxu0 0.0
  %2431 = vmatpush1.msra.mxu0 0.0
  %2432 = vmatprep.subr.mxu0 0.0
  %2433 = vmatpush1.msra.mxu0 0.0
  %2434 = vmatprep.subr.mxu0 0.0
  %2435 = vmatpush1.msra.mxu0 0.0
  %2436 = vmatprep.subr.mxu0 0.0
  %2437 = vmatpush1.msra.mxu0 0.0
  %2438 = vmatprep.subr.mxu0 0.0
  %2439 = vmatpush1.msra.mxu0 0.0
  %2440 = vmatprep.subr.mxu0 0.0
  %2441 = vmatpush1.msra.mxu0 0.0
  %2442 = vmatprep.subr.mxu0 0.0
  %2443 = vmatpush1.msra.mxu0 0.0
  %2444 = vmatprep.subr.mxu0 0.0
  %2445 = vmatpush1.msra.mxu0 0.0
  %2446 = vmatprep.subr.mxu0 0.0
  %2447 = vmatpush1.msra.mxu0 0.0
  %2448 = vmatprep.subr.mxu0 0.0
  %2449 = vmatpush1.msra.mxu0 0.0
  %2450 = vmatprep.subr.mxu0 0.0
  %2451 = vmatpush1.msra.mxu0 0.0
  %2452 = vmatprep.subr.mxu0 0.0
  %2453 = vmatpush1.msra.mxu0 0.0
  %2454 = vmatprep.subr.mxu0 0.0
  %2455 = vmatpush1.msra.mxu0 0.0
  %2456 = vmatprep.subr.mxu0 0.0
  %2457 = vmatpush1.msra.mxu0 0.0
  %2458 = vmatprep.subr.mxu0 0.0
  %2459 = vmatpush1.msra.mxu0 0.0
  %2460 = vmatprep.subr.mxu0 0.0
  %2461 = vmatpush1.msra.mxu0 0.0
  %2462 = vmatprep.subr.mxu0 0.0
  %2463 = vmatpush1.msra.mxu0 0.0
  %2464 = vmatprep.subr.mxu0 0.0
  %2465 = vmatpush1.msra.mxu0 0.0
  %2466 = vmatprep.subr.mxu0 0.0
  %2467 = vmatpush1.msra.mxu0 0.0
  %2468 = vmatprep.subr.mxu0 0.0
  %2469 = vmatpush1.msra.mxu0 0.0
  %2470 = vmatprep.subr.mxu0 0.0
  %2471 = vmatpush1.msra.mxu0 0.0
  %2472 = vmatprep.subr.mxu0 0.0
  %2473 = vmatpush1.msra.mxu0 0.0
  %2474 = vmatprep.subr.mxu0 0.0
  %2475 = vmatpush1.msra.mxu0 0.0
  %2476 = vmatprep.subr.mxu0 0.0
  %2477 = vmatpush1.msra.mxu0 0.0
  %2478 = vmatprep.subr.mxu0 0.0
  %2479 = vmatpush1.msra.mxu0 0.0
  %2480 = vmatprep.subr.mxu0 0.0
  %2481 = vmatpush1.msra.mxu0 0.0
  %2482 = vmatprep.subr.mxu0 0.0
  %2483 = vmatpush1.msra.mxu0 0.0
  %2484 = vmatprep.mubr.f32.mxu0 0.0
  %2485 = vmatmul.mubr.f32.gmra.mrb[0].mxu0 %v454
  %v2486 = vpop.f32.mrb[0].mxu0
  %v2487 = vadd.f32 0.0, %v2486
  %v2488 = vpop.f32.mrb[0].mxu0
  %2489 = vdwg.mxu0
  %v2490 = vadd.f32 %v2419, %v2487
  %2491 = vmatprep.subr.mxu0 0.0
  %2492 = vmatpush1.msra.mxu0 %v1915
  %2493 = vmatprep.subr.mxu0 0.0
  %2494 = vmatpush1.msra.mxu0 0.0
  %2495 = vmatprep.subr.mxu0 0.0
  %2496 = vmatpush1.msra.mxu0 0.0
  %2497 = vmatprep.subr.mxu0 0.0
  %2498 = vmatpush1.msra.mxu0 0.0
  %2499 = vmatprep.subr.mxu0 0.0
  %2500 = vmatpush1.msra.mxu0 0.0
  %2501 = vmatprep.subr.mxu0 0.0
  %2502 = vmatpush1.msra.mxu0 0.0
  %2503 = vmatprep.subr.mxu0 0.0
  %2504 = vmatpush1.msra.mxu0 0.0
  %2505 = vmatprep.subr.mxu0 0.0
  %2506 = vmatpush1.msra.mxu0 0.0
  %2507 = vmatprep.subr.mxu0 0.0
  %2508 = vmatpush1.msra.mxu0 0.0
  %2509 = vmatprep.subr.mxu0 0.0
  %2510 = vmatpush1.msra.mxu0 0.0
  %2511 = vmatprep.subr.mxu0 0.0
  %2512 = vmatpush1.msra.mxu0 0.0
  %2513 = vmatprep.subr.mxu0 0.0
  %2514 = vmatpush1.msra.mxu0 0.0
  %2515 = vmatprep.subr.mxu0 0.0
  %2516 = vmatpush1.msra.mxu0 0.0
  %2517 = vmatprep.subr.mxu0 0.0
  %2518 = vmatpush1.msra.mxu0 0.0
  %2519 = vmatprep.subr.mxu0 0.0
  %2520 = vmatpush1.msra.mxu0 0.0
  %2521 = vmatprep.subr.mxu0 0.0
  %2522 = vmatpush1.msra.mxu0 0.0
  %2523 = vmatprep.subr.mxu0 0.0
  %2524 = vmatpush1.msra.mxu0 0.0
  %2525 = vmatprep.subr.mxu0 0.0
  %2526 = vmatpush1.msra.mxu0 0.0
  %2527 = vmatprep.subr.mxu0 0.0
  %2528 = vmatpush1.msra.mxu0 0.0
  %2529 = vmatprep.subr.mxu0 0.0
  %2530 = vmatpush1.msra.mxu0 0.0
  %2531 = vmatprep.subr.mxu0 0.0
  %2532 = vmatpush1.msra.mxu0 0.0
  %2533 = vmatprep.subr.mxu0 0.0
  %2534 = vmatpush1.msra.mxu0 0.0
  %2535 = vmatprep.subr.mxu0 0.0
  %2536 = vmatpush1.msra.mxu0 0.0
  %2537 = vmatprep.subr.mxu0 0.0
  %2538 = vmatpush1.msra.mxu0 0.0
  %2539 = vmatprep.subr.mxu0 0.0
  %2540 = vmatpush1.msra.mxu0 0.0
  %2541 = vmatprep.subr.mxu0 0.0
  %2542 = vmatpush1.msra.mxu0 0.0
  %2543 = vmatprep.subr.mxu0 0.0
  %2544 = vmatpush1.msra.mxu0 0.0
  %2545 = vmatprep.subr.mxu0 0.0
  %2546 = vmatpush1.msra.mxu0 0.0
  %2547 = vmatprep.subr.mxu0 0.0
  %2548 = vmatpush1.msra.mxu0 0.0
  %2549 = vmatprep.subr.mxu0 0.0
  %2550 = vmatpush1.msra.mxu0 0.0
  %2551 = vmatprep.subr.mxu0 0.0
  %2552 = vmatpush1.msra.mxu0 0.0
  %2553 = vmatprep.subr.mxu0 0.0
  %2554 = vmatpush1.msra.mxu0 0.0
  %2555 = vmatprep.mubr.f32.mxu0 0.0
  %2556 = vmatmul.mubr.f32.gmra.mrb[0].mxu0 %v531
  %v2557 = vpop.f32.mrb[0].mxu0
  %v2558 = vadd.f32 0.0, %v2557
  %v2559 = vpop.f32.mrb[0].mxu0
  %2560 = vdwg.mxu0
  %v2561 = vadd.f32 %v2490, %v2558
  %2562 = vmatprep.subr.mxu0 0.0
  %2563 = vmatpush1.msra.mxu0 %v1989
  %2564 = vmatprep.subr.mxu0 0.0
  %2565 = vmatpush1.msra.mxu0 0.0
  %2566 = vmatprep.subr.mxu0 0.0
  %2567 = vmatpush1.msra.mxu0 0.0
  %2568 = vmatprep.subr.mxu0 0.0
  %2569 = vmatpush1.msra.mxu0 0.0
  %2570 = vmatprep.subr.mxu0 0.0
  %2571 = vmatpush1.msra.mxu0 0.0
  %2572 = vmatprep.subr.mxu0 0.0
  %2573 = vmatpush1.msra.mxu0 0.0
  %2574 = vmatprep.subr.mxu0 0.0
  %2575 = vmatpush1.msra.mxu0 0.0
  %2576 = vmatprep.subr.mxu0 0.0
  %2577 = vmatpush1.msra.mxu0 0.0
  %2578 = vmatprep.subr.mxu0 0.0
  %2579 = vmatpush1.msra.mxu0 0.0
  %2580 = vmatprep.subr.mxu0 0.0
  %2581 = vmatpush1.msra.mxu0 0.0
  %2582 = vmatprep.subr.mxu0 0.0
  %2583 = vmatpush1.msra.mxu0 0.0
  %2584 = vmatprep.subr.mxu0 0.0
  %2585 = vmatpush1.msra.mxu0 0.0
  %2586 = vmatprep.subr.mxu0 0.0
  %2587 = vmatpush1.msra.mxu0 0.0
  %2588 = vmatprep.subr.mxu0 0.0
  %2589 = vmatpush1.msra.mxu0 0.0
  %2590 = vmatprep.subr.mxu0 0.0
  %2591 = vmatpush1.msra.mxu0 0.0
  %2592 = vmatprep.subr.mxu0 0.0
  %2593 = vmatpush1.msra.mxu0 0.0
  %2594 = vmatprep.subr.mxu0 0.0
  %2595 = vmatpush1.msra.mxu0 0.0
  %2596 = vmatprep.subr.mxu0 0.0
  %2597 = vmatpush1.msra.mxu0 0.0
  %2598 = vmatprep.subr.mxu0 0.0
  %2599 = vmatpush1.msra.mxu0 0.0
  %2600 = vmatprep.subr.mxu0 0.0
  %2601 = vmatpush1.msra.mxu0 0.0
  %2602 = vmatprep.subr.mxu0 0.0
  %2603 = vmatpush1.msra.mxu0 0.0
  %2604 = vmatprep.subr.mxu0 0.0
  %2605 = vmatpush1.msra.mxu0 0.0
  %2606 = vmatprep.subr.mxu0 0.0
  %2607 = vmatpush1.msra.mxu0 0.0
  %2608 = vmatprep.subr.mxu0 0.0
  %2609 = vmatpush1.msra.mxu0 0.0
  %2610 = vmatprep.subr.mxu0 0.0
  %2611 = vmatpush1.msra.mxu0 0.0
  %2612 = vmatprep.subr.mxu0 0.0
  %2613 = vmatpush1.msra.mxu0 0.0
  %2614 = vmatprep.subr.mxu0 0.0
  %2615 = vmatpush1.msra.mxu0 0.0
  %2616 = vmatprep.subr.mxu0 0.0
  %2617 = vmatpush1.msra.mxu0 0.0
  %2618 = vmatprep.subr.mxu0 0.0
  %2619 = vmatpush1.msra.mxu0 0.0
  %2620 = vmatprep.subr.mxu0 0.0
  %2621 = vmatpush1.msra.mxu0 0.0
  %2622 = vmatprep.subr.mxu0 0.0
  %2623 = vmatpush1.msra.mxu0 0.0
  %2624 = vmatprep.subr.mxu0 0.0
  %2625 = vmatpush1.msra.mxu0 0.0
  %2626 = vmatprep.mubr.f32.mxu0 0.0
  %2627 = vmatmul.mubr.f32.gmra.mrb[0].mxu0 %v608
  %v2628 = vpop.f32.mrb[0].mxu0
  %v2629 = vadd.f32 0.0, %v2628
  %v2630 = vpop.f32.mrb[0].mxu0
  %2631 = vdwg.mxu0
  %v2632 = vadd.f32 %v2561, %v2629
  %v2634 = vsel %vm70, %v64, 0
  %2636 = vmatprep.subr.mxu0 0.0
  %2637 = vmatpush1.msra.mxu0 %v2634
  %2638 = vmatprep.subr.mxu0 0.0
  %2639 = vmatpush1.msra.mxu0 0.0
  %2640 = vmatprep.subr.mxu0 0.0
  %2641 = vmatpush1.msra.mxu0 0.0
  %2642 = vmatprep.subr.mxu0 0.0
  %2643 = vmatpush1.msra.mxu0 0.0
  %2644 = vmatprep.subr.mxu0 0.0
  %2645 = vmatpush1.msra.mxu0 0.0
  %2646 = vmatprep.subr.mxu0 0.0
  %2647 = vmatpush1.msra.mxu0 0.0
  %2648 = vmatprep.subr.mxu0 0.0
  %2649 = vmatpush1.msra.mxu0 0.0
  %2650 = vmatprep.subr.mxu0 0.0
  %2651 = vmatpush1.msra.mxu0 0.0
  %2652 = vmatprep.subr.mxu0 0.0
  %2653 = vmatpush1.msra.mxu0 0.0
  %2654 = vmatprep.subr.mxu0 0.0
  %2655 = vmatpush1.msra.mxu0 0.0
  %2656 = vmatprep.subr.mxu0 0.0
  %2657 = vmatpush1.msra.mxu0 0.0
  %2658 = vmatprep.subr.mxu0 0.0
  %2659 = vmatpush1.msra.mxu0 0.0
  %2660 = vmatprep.subr.mxu0 0.0
  %2661 = vmatpush1.msra.mxu0 0.0
  %2662 = vmatprep.subr.mxu0 0.0
  %2663 = vmatpush1.msra.mxu0 0.0
  %2664 = vmatprep.subr.mxu0 0.0
  %2665 = vmatpush1.msra.mxu0 0.0
  %2666 = vmatprep.subr.mxu0 0.0
  %2667 = vmatpush1.msra.mxu0 0.0
  %2668 = vmatprep.subr.mxu0 0.0
  %2669 = vmatpush1.msra.mxu0 0.0
  %2670 = vmatprep.subr.mxu0 0.0
  %2671 = vmatpush1.msra.mxu0 0.0
  %2672 = vmatprep.subr.mxu0 0.0
  %2673 = vmatpush1.msra.mxu0 0.0
  %2674 = vmatprep.subr.mxu0 0.0
  %2675 = vmatpush1.msra.mxu0 0.0
  %2676 = vmatprep.subr.mxu0 0.0
  %2677 = vmatpush1.msra.mxu0 0.0
  %2678 = vmatprep.subr.mxu0 0.0
  %2679 = vmatpush1.msra.mxu0 0.0
  %2680 = vmatprep.subr.mxu0 0.0
  %2681 = vmatpush1.msra.mxu0 0.0
  %2682 = vmatprep.subr.mxu0 0.0
  %2683 = vmatpush1.msra.mxu0 0.0
  %2684 = vmatprep.subr.mxu0 0.0
  %2685 = vmatpush1.msra.mxu0 0.0
  %2686 = vmatprep.subr.mxu0 0.0
  %2687 = vmatpush1.msra.mxu0 0.0
  %2688 = vmatprep.subr.mxu0 0.0
  %2689 = vmatpush1.msra.mxu0 0.0
  %2690 = vmatprep.subr.mxu0 0.0
  %2691 = vmatpush1.msra.mxu0 0.0
  %2692 = vmatprep.subr.mxu0 0.0
  %2693 = vmatpush1.msra.mxu0 0.0
  %2694 = vmatprep.subr.mxu0 0.0
  %2695 = vmatpush1.msra.mxu0 0.0
  %2696 = vmatprep.subr.mxu0 0.0
  %2697 = vmatpush1.msra.mxu0 0.0
  %2698 = vmatprep.subr.mxu0 0.0
  %2699 = vmatpush1.msra.mxu0 0.0
  %2700 = vmatprep.mubr.f32.mxu0 0.0
  %2701 = vmatmul.mubr.f32.gmra.mrb[0].mxu0 %v685
  %v2702 = vpop.f32.mrb[0].mxu0
  %v2703 = vadd.f32 0.0, %v2702
  %v2704 = vpop.f32.mrb[0].mxu0
  %2705 = vdwg.mxu0
  %v2706 = vadd.f32 %v2632, %v2703
  %v2707 = vmax.f32 %v2062, %v2706
  %v2708 = vld [vmem:[%s2] sm:$0xff]
  %2710 = vset.pattern.permute.xlu0 0
  %2711 = vperm.xlu0 %2710, %v2708
  %v2712 = vpop.permute.xlu0 %2711
  %v2714 = vadd.f32 %v2707, %v2712
  %v2715 = vmax.f32 %v2714, 0.0
  %2716 = vst [vmem:[%s4] sm:$0xff] %v2715
  // Predicated region
  $region18: #{tile_task_forward.1} parent=0 // pred_check
    _
  $region19: #{tile_task_forward.1} parent=0 // pred_check_branch
    %2718 = sbr.rel (0) target = $region21
  $region20: #{tile_task_forward.1} parent=0 // pred_region
    _
  $region21: #{tile_task_forward.1} parent=0 // pred_fallthru
    _
  // Predicated region
  $region22: #{tile_task_forward.1} parent=0 // pred_check
    _
  $region23: #{tile_task_forward.1} parent=0 // pred_check_branch
    %2720 = sbr.rel (0) target = $region25
  $region24: #{tile_task_forward.1} parent=0 // pred_region
    _
  $region25: #{tile_task_forward.1} parent=0 // pred_fallthru
    _

</llo_original>
